<compile_context>
chip_gen: v7x
topology: tpu7x:2x2x1
jax: 0.10.0
libtpu: 0.0.40
codegen_flags: <defaults>
</compile_context>

<pallas_src>
import functools

import jax
import jax.numpy as jnp
from jax import lax
from jax.experimental import pallas as pl
from jax.experimental.pallas import tpu as pltpu


def _round_up(x, m):
    return (x + m - 1) // m * m


def _rnn_kernel(B, ids_ref, emb_hbm, w_ih_ref, w_hh_ref, b_ref, w_fc_ref,
                b_fc_ref, out_ref, emb_vmem, xw_ref, sem):
    T, Bp, Hp = xw_ref.shape

    # (0) Zero the staging slab so pad batch rows / pad lanes are well-defined,
    #     then gather the T*B real embedding rows with row DMAs from HBM.
    emb_vmem[...] = jnp.zeros_like(emb_vmem)

    copies = []
    for t in range(T):
        for b in range(B):
            tok = ids_ref[b, t]                        # scalar token id (SMEM)
            row = t * Bp + b                           # static dst row
            cp = pltpu.make_async_copy(
                emb_hbm.at[pl.ds(tok, 1), :],          # (1, Ep) row in HBM
                emb_vmem.at[pl.ds(row, 1), :],         # (1, Ep) row in VMEM
                sem.at[t, b])
            cp.start()
            copies.append(cp)
    for cp in copies:                                  # all 16 DMAs overlap
        cp.wait()

    # (1) Hoisted input projection: xW[t] = emb[t] @ W_ih^T + (b_ih + b_hh)
    #     for all T steps in one lane-dense MXU matmul.
    xw = (jnp.dot(emb_vmem[...], w_ih_ref[...],
                  preferred_element_type=jnp.float32) + b_ref[...])
    xw_ref[...] = xw.reshape(T, Bp, Hp)                # layout-free split

    # (2) Serial recurrence: h_t = tanh(xW[t] + h_{t-1} @ W_hh^T), unrolled so
    #     the LLO scheduler sees the whole latency chain.
    w_hh = w_hh_ref[...]

    def step(t, h):
        return jnp.tanh(xw_ref[t] +
                        jnp.dot(h, w_hh, preferred_element_type=jnp.float32))

    h = lax.fori_loop(0, T, step, jnp.zeros((Bp, Hp), jnp.float32),
                      unroll=True)

    # (3) Fused final Linear on the last hidden state.
    out_ref[...] = (jnp.dot(h, w_fc_ref[...],
                            preferred_element_type=jnp.float32)
                    + b_fc_ref[...]).astype(out_ref.dtype)


def prepare_params(emb_table, w_ih, w_hh, b_ih, b_hh, w_fc, b_fc):
    """One-time (init-time) parameter prep: transpose + zero-pad to lane-dense
    layouts so the kernel only does dense (M,K)@(K,N) matmuls and whole-row
    DMAs.  Call once and reuse; do NOT redo this per forward call."""
    V, E = emb_table.shape
    H = w_hh.shape[0]
    O = w_fc.shape[0]
    Ep, Hp, Op = _round_up(E, 128), _round_up(H, 128), _round_up(O, 128)
    return {
        "emb": jnp.pad(emb_table, ((0, 0), (0, Ep - E))),            # (V, Ep)
        "w_ih": jnp.pad(w_ih.T, ((0, Ep - E), (0, Hp - H))),         # (Ep, Hp)
        "w_hh": jnp.pad(w_hh.T, ((0, Hp - H), (0, Hp - H))),         # (Hp, Hp)
        "b": jnp.pad((b_ih + b_hh).reshape(1, H), ((0, 0), (0, Hp - H))),
        "w_fc": jnp.pad(w_fc.T, ((0, Hp - H), (0, Op - O))),         # (Hp, Op)
        "b_fc": jnp.pad(b_fc.reshape(1, O), ((0, 0), (0, Op - O))),  # (1, Op)
    }


def rnn_forward(x, params, *, output_size):
    """x: (B, T) int32 token ids; params from prepare_params(). -> (B, O)."""
    B, T = x.shape
    Ep = params["emb"].shape[1]
    Hp = params["w_hh"].shape[1]
    Op = params["w_fc"].shape[1]
    Bp = _round_up(B, 8)

    smem = pl.BlockSpec(memory_space=pltpu.MemorySpace.SMEM)
    vmem = pl.BlockSpec(memory_space=pltpu.MemorySpace.VMEM)
    hbm = pl.BlockSpec(memory_space=pl.ANY)   # table stays in HBM; rows DMA'd

    out_p = pl.pallas_call(
        functools.partial(_rnn_kernel, B),
        out_shape=jax.ShapeDtypeStruct((Bp, Op), jnp.float32),
        in_specs=[smem, hbm, vmem, vmem, vmem, vmem, vmem],
        out_specs=vmem,
        scratch_shapes=[
            pltpu.VMEM((T * Bp, Ep), jnp.float32),   # gathered embedding slab
            pltpu.VMEM((T, Bp, Hp), jnp.float32),    # hoisted xW[t]
            pltpu.SemaphoreType.DMA((T, Bp)),        # one sem per row DMA
        ],
    )(x.astype(jnp.int32), params["emb"], params["w_ih"], params["w_hh"],
      params["b"], params["w_fc"], params["b_fc"])

    # Slice off padded batch rows / output lanes (pad lanes are exact zero).
    return out_p[:B, :output_size]


def rnn_reference(x, emb_table, w_ih, w_hh, b_ih, b_hh, w_fc, b_fc):
    emb = jnp.take(emb_table, x, axis=0)             # (B, T, E)
    B, T, _ = emb.shape
    H = w_hh.shape[0]
    h = jnp.zeros((B, H), jnp.float32)
    for t in range(T):
        h = jnp.tanh(emb[:, t, :] @ w_ih.T + b_ih + h @ w_hh.T + b_hh)
    return h @ w_fc.T + b_fc


if __name__ == "__main__":
    # Small, deterministic config consistent with the module's forward.
    vocab_size, padding_idx = 100, 0
    emb_size, hidden_size, output_size = 300, 50, 4
    B, T = 2, 8

    key = jax.random.PRNGKey(0)
    k_emb, k_ih, k_hh, k_bih, k_bhh, k_fc, k_bfc, k_x = jax.random.split(key, 8)

    emb_table = jax.random.normal(k_emb, (vocab_size, emb_size), jnp.float32)
    emb_table = emb_table.at[padding_idx].set(0.0)   # padding_idx row zeroed

    s = 1.0 / jnp.sqrt(hidden_size)
    w_ih = jax.random.uniform(k_ih, (hidden_size, emb_size), jnp.float32, -s, s)
    w_hh = jax.random.uniform(k_hh, (hidden_size, hidden_size), jnp.float32, -s, s)
    b_ih = jax.random.uniform(k_bih, (hidden_size,), jnp.float32, -s, s)
    b_hh = jax.random.uniform(k_bhh, (hidden_size,), jnp.float32, -s, s)
    w_fc = jax.random.uniform(k_fc, (output_size, hidden_size), jnp.float32, -s, s)
    b_fc = jax.random.uniform(k_bfc, (output_size,), jnp.float32, -s, s)

    x = jax.random.randint(k_x, (B, T), 0, vocab_size, dtype=jnp.int32)

    # One-time parameter prep (hoisted out of the per-call path).
    params = prepare_params(emb_table, w_ih, w_hh, b_ih, b_hh, w_fc, b_fc)

    # Jit the wrapper so the pallas_call + final slice is a single dispatch.
    fwd = jax.jit(functools.partial(rnn_forward, output_size=output_size))
    out = jax.block_until_ready(fwd(x, params))

    ref = rnn_reference(x, emb_table, w_ih, w_hh, b_ih, b_hh, w_fc, b_fc)
    assert out.shape == (B, output_size)
    assert jnp.allclose(out, ref, atol=1e-4, rtol=1e-4)
    print("KERNEL_OK")
</pallas_src>

<mosaic_0001>
module attributes {stable_mosaic.version = 11 : i64} {
  func.func @_rnn_kernel(%arg0: memref<2x8xi32, #tpu.memory_space<smem>>, %arg1: memref<100x384xf32, #tpu.memory_space<any>>, %arg2: memref<384x128xf32, #tpu.memory_space<vmem>>, %arg3: memref<128x128xf32, #tpu.memory_space<vmem>>, %arg4: memref<1x128xf32, #tpu.memory_space<vmem>>, %arg5: memref<128x128xf32, #tpu.memory_space<vmem>>, %arg6: memref<1x128xf32, #tpu.memory_space<vmem>>, %arg7: memref<8x128xf32, #tpu.memory_space<vmem>>, %arg8: memref<64x384xf32, #tpu.memory_space<vmem>>, %arg9: memref<8x8x128xf32, #tpu.memory_space<vmem>>, %arg10: memref<8x8x!tpu.dma_semaphore, #tpu.memory_space<semaphore_mem>>) attributes {dimension_semantics = [], scalar_prefetch = 0 : i64, scratch_operands = 3 : i64, tpu.core_type = #tpu.core_type<tc>} {
    %cst = arith.constant 0.000000e+00 : f32
    %0 = vector.broadcast %cst : f32 to vector<64x384xf32>
    %c0 = arith.constant 0 : index
    %c0_0 = arith.constant 0 : index
    %1 = vector.load %arg8[%c0, %c0_0] : memref<64x384xf32, #tpu.memory_space<vmem>>, vector<64x384xf32>
    tpu.vector_store %arg8[%c0, %c0_0], %0 {strides = array<i32>} : memref<64x384xf32, #tpu.memory_space<vmem>>, vector<64x384xf32>,
    %c0_1 = arith.constant 0 : index
    %c0_2 = arith.constant 0 : index
    %2 = memref.load %arg0[%c0_1, %c0_2] : memref<2x8xi32, #tpu.memory_space<smem>>
    %c0_i32 = arith.constant 0 : i32
    %c0_i32_3 = arith.constant 0 : i32
    %c0_i32_4 = arith.constant 0 : i32
    %3 = tpu.memref_slice %arg1[%2, %c0_i32_4] : memref<100x384xf32, #tpu.memory_space<any>> -> memref<1x384xf32, #tpu.memory_space<any>>
    %c0_i32_5 = arith.constant 0 : i32
    %c0_i32_6 = arith.constant 0 : i32
    %4 = tpu.memref_slice %arg8[%c0_i32_5, %c0_i32_6] : memref<64x384xf32, #tpu.memory_space<vmem>> -> memref<1x384xf32, #tpu.memory_space<vmem>>
    %5 = tpu.memref_slice %arg10[%c0_i32, %c0_i32_3] : memref<8x8x!tpu.dma_semaphore, #tpu.memory_space<semaphore_mem>> -> memref<1x1x!tpu.dma_semaphore, #tpu.memory_space<semaphore_mem>>
    %6 = tpu.memref_squeeze %5 : memref<1x1x!tpu.dma_semaphore, #tpu.memory_space<semaphore_mem>> -> memref<!tpu.dma_semaphore, #tpu.memory_space<semaphore_mem>>
    tpu.enqueue_dma source(%3 : memref<1x384xf32, #tpu.memory_space<any>>) target(%4 : memref<1x384xf32, #tpu.memory_space<vmem>>) target_semaphore(%6 : memref<!tpu.dma_semaphore, #tpu.memory_space<semaphore_mem>>)
    %c1 = arith.constant 1 : index
    %c0_7 = arith.constant 0 : index
    %7 = memref.load %arg0[%c1, %c0_7] : memref<2x8xi32, #tpu.memory_space<smem>>
    %c0_i32_8 = arith.constant 0 : i32
    %c1_i32 = arith.constant 1 : i32
    %c0_i32_9 = arith.constant 0 : i32
    %8 = tpu.memref_slice %arg1[%7, %c0_i32_9] : memref<100x384xf32, #tpu.memory_space<any>> -> memref<1x384xf32, #tpu.memory_space<any>>
    %c1_i32_10 = arith.constant 1 : i32
    %c0_i32_11 = arith.constant 0 : i32
    %9 = tpu.memref_slice %arg8[%c1_i32_10, %c0_i32_11] : memref<64x384xf32, #tpu.memory_space<vmem>> -> memref<1x384xf32, #tpu.memory_space<vmem>>
    %10 = tpu.memref_slice %arg10[%c0_i32_8, %c1_i32] : memref<8x8x!tpu.dma_semaphore, #tpu.memory_space<semaphore_mem>> -> memref<1x1x!tpu.dma_semaphore, #tpu.memory_space<semaphore_mem>>
    %11 = tpu.memref_squeeze %10 : memref<1x1x!tpu.dma_semaphore, #tpu.memory_space<semaphore_mem>> -> memref<!tpu.dma_semaphore, #tpu.memory_space<semaphore_mem>>
    tpu.enqueue_dma source(%8 : memref<1x384xf32, #tpu.memory_space<any>>) target(%9 : memref<1x384xf32, #tpu.memory_space<vmem>>) target_semaphore(%11 : memref<!tpu.dma_semaphore, #tpu.memory_space<semaphore_mem>>)
    %c0_12 = arith.constant 0 : index
    %c1_13 = arith.constant 1 : index
    %12 = memref.load %arg0[%c0_12, %c1_13] : memref<2x8xi32, #tpu.memory_space<smem>>
    %c1_i32_14 = arith.constant 1 : i32
    %c0_i32_15 = arith.constant 0 : i32
    %c0_i32_16 = arith.constant 0 : i32
    %13 = tpu.memref_slice %arg1[%12, %c0_i32_16] : memref<100x384xf32, #tpu.memory_space<any>> -> memref<1x384xf32, #tpu.memory_space<any>>
    %c8_i32 = arith.constant 8 : i32
    %c0_i32_17 = arith.constant 0 : i32
    %14 = tpu.memref_slice %arg8[%c8_i32, %c0_i32_17] : memref<64x384xf32, #tpu.memory_space<vmem>> -> memref<1x384xf32, #tpu.memory_space<vmem>>
    %15 = tpu.memref_slice %arg10[%c1_i32_14, %c0_i32_15] : memref<8x8x!tpu.dma_semaphore, #tpu.memory_space<semaphore_mem>> -> memref<1x1x!tpu.dma_semaphore, #tpu.memory_space<semaphore_mem>>
    %16 = tpu.memref_squeeze %15 : memref<1x1x!tpu.dma_semaphore, #tpu.memory_space<semaphore_mem>> -> memref<!tpu.dma_semaphore, #tpu.memory_space<semaphore_mem>>
    tpu.enqueue_dma source(%13 : memref<1x384xf32, #tpu.memory_space<any>>) target(%14 : memref<1x384xf32, #tpu.memory_space<vmem>>) target_semaphore(%16 : memref<!tpu.dma_semaphore, #tpu.memory_space<semaphore_mem>>)
    %c1_18 = arith.constant 1 : index
    %c1_19 = arith.constant 1 : index
    %17 = memref.load %arg0[%c1_18, %c1_19] : memref<2x8xi32, #tpu.memory_space<smem>>
    %c1_i32_20 = arith.constant 1 : i32
    %c1_i32_21 = arith.constant 1 : i32
    %c0_i32_22 = arith.constant 0 : i32
    %18 = tpu.memref_slice %arg1[%17, %c0_i32_22] : memref<100x384xf32, #tpu.memory_space<any>> -> memref<1x384xf32, #tpu.memory_space<any>>
    %c9_i32 = arith.constant 9 : i32
    %c0_i32_23 = arith.constant 0 : i32
    %19 = tpu.memref_slice %arg8[%c9_i32, %c0_i32_23] : memref<64x384xf32, #tpu.memory_space<vmem>> -> memref<1x384xf32, #tpu.memory_space<vmem>>
    %20 = tpu.memref_slice %arg10[%c1_i32_20, %c1_i32_21] : memref<8x8x!tpu.dma_semaphore, #tpu.memory_space<semaphore_mem>> -> memref<1x1x!tpu.dma_semaphore, #tpu.memory_space<semaphore_mem>>
    %21 = tpu.memref_squeeze %20 : memref<1x1x!tpu.dma_semaphore, #tpu.memory_space<semaphore_mem>> -> memref<!tpu.dma_semaphore, #tpu.memory_space<semaphore_mem>>
    tpu.enqueue_dma source(%18 : memref<1x384xf32, #tpu.memory_space<any>>) target(%19 : memref<1x384xf32, #tpu.memory_space<vmem>>) target_semaphore(%21 : memref<!tpu.dma_semaphore, #tpu.memory_space<semaphore_mem>>)
    %c0_24 = arith.constant 0 : index
    %c2 = arith.constant 2 : index
    %22 = memref.load %arg0[%c0_24, %c2] : memref<2x8xi32, #tpu.memory_space<smem>>
    %c2_i32 = arith.constant 2 : i32
    %c0_i32_25 = arith.constant 0 : i32
    %c0_i32_26 = arith.constant 0 : i32
    %23 = tpu.memref_slice %arg1[%22, %c0_i32_26] : memref<100x384xf32, #tpu.memory_space<any>> -> memref<1x384xf32, #tpu.memory_space<any>>
    %c16_i32 = arith.constant 16 : i32
    %c0_i32_27 = arith.constant 0 : i32
    %24 = tpu.memref_slice %arg8[%c16_i32, %c0_i32_27] : memref<64x384xf32, #tpu.memory_space<vmem>> -> memref<1x384xf32, #tpu.memory_space<vmem>>
    %25 = tpu.memref_slice %arg10[%c2_i32, %c0_i32_25] : memref<8x8x!tpu.dma_semaphore, #tpu.memory_space<semaphore_mem>> -> memref<1x1x!tpu.dma_semaphore, #tpu.memory_space<semaphore_mem>>
    %26 = tpu.memref_squeeze %25 : memref<1x1x!tpu.dma_semaphore, #tpu.memory_space<semaphore_mem>> -> memref<!tpu.dma_semaphore, #tpu.memory_space<semaphore_mem>>
    tpu.enqueue_dma source(%23 : memref<1x384xf32, #tpu.memory_space<any>>) target(%24 : memref<1x384xf32, #tpu.memory_space<vmem>>) target_semaphore(%26 : memref<!tpu.dma_semaphore, #tpu.memory_space<semaphore_mem>>)
    %c1_28 = arith.constant 1 : index
    %c2_29 = arith.constant 2 : index
    %27 = memref.load %arg0[%c1_28, %c2_29] : memref<2x8xi32, #tpu.memory_space<smem>>
    %c2_i32_30 = arith.constant 2 : i32
    %c1_i32_31 = arith.constant 1 : i32
    %c0_i32_32 = arith.constant 0 : i32
    %28 = tpu.memref_slice %arg1[%27, %c0_i32_32] : memref<100x384xf32, #tpu.memory_space<any>> -> memref<1x384xf32, #tpu.memory_space<any>>
    %c17_i32 = arith.constant 17 : i32
    %c0_i32_33 = arith.constant 0 : i32
    %29 = tpu.memref_slice %arg8[%c17_i32, %c0_i32_33] : memref<64x384xf32, #tpu.memory_space<vmem>> -> memref<1x384xf32, #tpu.memory_space<vmem>>
    %30 = tpu.memref_slice %arg10[%c2_i32_30, %c1_i32_31] : memref<8x8x!tpu.dma_semaphore, #tpu.memory_space<semaphore_mem>> -> memref<1x1x!tpu.dma_semaphore, #tpu.memory_space<semaphore_mem>>
    %31 = tpu.memref_squeeze %30 : memref<1x1x!tpu.dma_semaphore, #tpu.memory_space<semaphore_mem>> -> memref<!tpu.dma_semaphore, #tpu.memory_space<semaphore_mem>>
    tpu.enqueue_dma source(%28 : memref<1x384xf32, #tpu.memory_space<any>>) target(%29 : memref<1x384xf32, #tpu.memory_space<vmem>>) target_semaphore(%31 : memref<!tpu.dma_semaphore, #tpu.memory_space<semaphore_mem>>)
    %c0_34 = arith.constant 0 : index
    %c3 = arith.constant 3 : index
    %32 = memref.load %arg0[%c0_34, %c3] : memref<2x8xi32, #tpu.memory_space<smem>>
    %c3_i32 = arith.constant 3 : i32
    %c0_i32_35 = arith.constant 0 : i32
    %c0_i32_36 = arith.constant 0 : i32
    %33 = tpu.memref_slice %arg1[%32, %c0_i32_36] : memref<100x384xf32, #tpu.memory_space<any>> -> memref<1x384xf32, #tpu.memory_space<any>>
    %c24_i32 = arith.constant 24 : i32
    %c0_i32_37 = arith.constant 0 : i32
    %34 = tpu.memref_slice %arg8[%c24_i32, %c0_i32_37] : memref<64x384xf32, #tpu.memory_space<vmem>> -> memref<1x384xf32, #tpu.memory_space<vmem>>
    %35 = tpu.memref_slice %arg10[%c3_i32, %c0_i32_35] : memref<8x8x!tpu.dma_semaphore, #tpu.memory_space<semaphore_mem>> -> memref<1x1x!tpu.dma_semaphore, #tpu.memory_space<semaphore_mem>>
    %36 = tpu.memref_squeeze %35 : memref<1x1x!tpu.dma_semaphore, #tpu.memory_space<semaphore_mem>> -> memref<!tpu.dma_semaphore, #tpu.memory_space<semaphore_mem>>
    tpu.enqueue_dma source(%33 : memref<1x384xf32, #tpu.memory_space<any>>) target(%34 : memref<1x384xf32, #tpu.memory_space<vmem>>) target_semaphore(%36 : memref<!tpu.dma_semaphore, #tpu.memory_space<semaphore_mem>>)
    %c1_38 = arith.constant 1 : index
    %c3_39 = arith.constant 3 : index
    %37 = memref.load %arg0[%c1_38, %c3_39] : memref<2x8xi32, #tpu.memory_space<smem>>
    %c3_i32_40 = arith.constant 3 : i32
    %c1_i32_41 = arith.constant 1 : i32
    %c0_i32_42 = arith.constant 0 : i32
    %38 = tpu.memref_slice %arg1[%37, %c0_i32_42] : memref<100x384xf32, #tpu.memory_space<any>> -> memref<1x384xf32, #tpu.memory_space<any>>
    %c25_i32 = arith.constant 25 : i32
    %c0_i32_43 = arith.constant 0 : i32
    %39 = tpu.memref_slice %arg8[%c25_i32, %c0_i32_43] : memref<64x384xf32, #tpu.memory_space<vmem>> -> memref<1x384xf32, #tpu.memory_space<vmem>>
    %40 = tpu.memref_slice %arg10[%c3_i32_40, %c1_i32_41] : memref<8x8x!tpu.dma_semaphore, #tpu.memory_space<semaphore_mem>> -> memref<1x1x!tpu.dma_semaphore, #tpu.memory_space<semaphore_mem>>
    %41 = tpu.memref_squeeze %40 : memref<1x1x!tpu.dma_semaphore, #tpu.memory_space<semaphore_mem>> -> memref<!tpu.dma_semaphore, #tpu.memory_space<semaphore_mem>>
    tpu.enqueue_dma source(%38 : memref<1x384xf32, #tpu.memory_space<any>>) target(%39 : memref<1x384xf32, #tpu.memory_space<vmem>>) target_semaphore(%41 : memref<!tpu.dma_semaphore, #tpu.memory_space<semaphore_mem>>)
    %c0_44 = arith.constant 0 : index
    %c4 = arith.constant 4 : index
    %42 = memref.load %arg0[%c0_44, %c4] : memref<2x8xi32, #tpu.memory_space<smem>>
    %c4_i32 = arith.constant 4 : i32
    %c0_i32_45 = arith.constant 0 : i32
    %c0_i32_46 = arith.constant 0 : i32
    %43 = tpu.memref_slice %arg1[%42, %c0_i32_46] : memref<100x384xf32, #tpu.memory_space<any>> -> memref<1x384xf32, #tpu.memory_space<any>>
    %c32_i32 = arith.constant 32 : i32
    %c0_i32_47 = arith.constant 0 : i32
    %44 = tpu.memref_slice %arg8[%c32_i32, %c0_i32_47] : memref<64x384xf32, #tpu.memory_space<vmem>> -> memref<1x384xf32, #tpu.memory_space<vmem>>
    %45 = tpu.memref_slice %arg10[%c4_i32, %c0_i32_45] : memref<8x8x!tpu.dma_semaphore, #tpu.memory_space<semaphore_mem>> -> memref<1x1x!tpu.dma_semaphore, #tpu.memory_space<semaphore_mem>>
    %46 = tpu.memref_squeeze %45 : memref<1x1x!tpu.dma_semaphore, #tpu.memory_space<semaphore_mem>> -> memref<!tpu.dma_semaphore, #tpu.memory_space<semaphore_mem>>
    tpu.enqueue_dma source(%43 : memref<1x384xf32, #tpu.memory_space<any>>) target(%44 : memref<1x384xf32, #tpu.memory_space<vmem>>) target_semaphore(%46 : memref<!tpu.dma_semaphore, #tpu.memory_space<semaphore_mem>>)
    %c1_48 = arith.constant 1 : index
    %c4_49 = arith.constant 4 : index
    %47 = memref.load %arg0[%c1_48, %c4_49] : memref<2x8xi32, #tpu.memory_space<smem>>
    %c4_i32_50 = arith.constant 4 : i32
    %c1_i32_51 = arith.constant 1 : i32
    %c0_i32_52 = arith.constant 0 : i32
    %48 = tpu.memref_slice %arg1[%47, %c0_i32_52] : memref<100x384xf32, #tpu.memory_space<any>> -> memref<1x384xf32, #tpu.memory_space<any>>
    %c33_i32 = arith.constant 33 : i32
    %c0_i32_53 = arith.constant 0 : i32
    %49 = tpu.memref_slice %arg8[%c33_i32, %c0_i32_53] : memref<64x384xf32, #tpu.memory_space<vmem>> -> memref<1x384xf32, #tpu.memory_space<vmem>>
    %50 = tpu.memref_slice %arg10[%c4_i32_50, %c1_i32_51] : memref<8x8x!tpu.dma_semaphore, #tpu.memory_space<semaphore_mem>> -> memref<1x1x!tpu.dma_semaphore, #tpu.memory_space<semaphore_mem>>
    %51 = tpu.memref_squeeze %50 : memref<1x1x!tpu.dma_semaphore, #tpu.memory_space<semaphore_mem>> -> memref<!tpu.dma_semaphore, #tpu.memory_space<semaphore_mem>>
    tpu.enqueue_dma source(%48 : memref<1x384xf32, #tpu.memory_space<any>>) target(%49 : memref<1x384xf32, #tpu.memory_space<vmem>>) target_semaphore(%51 : memref<!tpu.dma_semaphore, #tpu.memory_space<semaphore_mem>>)
    %c0_54 = arith.constant 0 : index
    %c5 = arith.constant 5 : index
    %52 = memref.load %arg0[%c0_54, %c5] : memref<2x8xi32, #tpu.memory_space<smem>>
    %c5_i32 = arith.constant 5 : i32
    %c0_i32_55 = arith.constant 0 : i32
    %c0_i32_56 = arith.constant 0 : i32
    %53 = tpu.memref_slice %arg1[%52, %c0_i32_56] : memref<100x384xf32, #tpu.memory_space<any>> -> memref<1x384xf32, #tpu.memory_space<any>>
    %c40_i32 = arith.constant 40 : i32
    %c0_i32_57 = arith.constant 0 : i32
    %54 = tpu.memref_slice %arg8[%c40_i32, %c0_i32_57] : memref<64x384xf32, #tpu.memory_space<vmem>> -> memref<1x384xf32, #tpu.memory_space<vmem>>
    %55 = tpu.memref_slice %arg10[%c5_i32, %c0_i32_55] : memref<8x8x!tpu.dma_semaphore, #tpu.memory_space<semaphore_mem>> -> memref<1x1x!tpu.dma_semaphore, #tpu.memory_space<semaphore_mem>>
    %56 = tpu.memref_squeeze %55 : memref<1x1x!tpu.dma_semaphore, #tpu.memory_space<semaphore_mem>> -> memref<!tpu.dma_semaphore, #tpu.memory_space<semaphore_mem>>
    tpu.enqueue_dma source(%53 : memref<1x384xf32, #tpu.memory_space<any>>) target(%54 : memref<1x384xf32, #tpu.memory_space<vmem>>) target_semaphore(%56 : memref<!tpu.dma_semaphore, #tpu.memory_space<semaphore_mem>>)
    %c1_58 = arith.constant 1 : index
    %c5_59 = arith.constant 5 : index
    %57 = memref.load %arg0[%c1_58, %c5_59] : memref<2x8xi32, #tpu.memory_space<smem>>
    %c5_i32_60 = arith.constant 5 : i32
    %c1_i32_61 = arith.constant 1 : i32
    %c0_i32_62 = arith.constant 0 : i32
    %58 = tpu.memref_slice %arg1[%57, %c0_i32_62] : memref<100x384xf32, #tpu.memory_space<any>> -> memref<1x384xf32, #tpu.memory_space<any>>
    %c41_i32 = arith.constant 41 : i32
    %c0_i32_63 = arith.constant 0 : i32
    %59 = tpu.memref_slice %arg8[%c41_i32, %c0_i32_63] : memref<64x384xf32, #tpu.memory_space<vmem>> -> memref<1x384xf32, #tpu.memory_space<vmem>>
    %60 = tpu.memref_slice %arg10[%c5_i32_60, %c1_i32_61] : memref<8x8x!tpu.dma_semaphore, #tpu.memory_space<semaphore_mem>> -> memref<1x1x!tpu.dma_semaphore, #tpu.memory_space<semaphore_mem>>
    %61 = tpu.memref_squeeze %60 : memref<1x1x!tpu.dma_semaphore, #tpu.memory_space<semaphore_mem>> -> memref<!tpu.dma_semaphore, #tpu.memory_space<semaphore_mem>>
    tpu.enqueue_dma source(%58 : memref<1x384xf32, #tpu.memory_space<any>>) target(%59 : memref<1x384xf32, #tpu.memory_space<vmem>>) target_semaphore(%61 : memref<!tpu.dma_semaphore, #tpu.memory_space<semaphore_mem>>)
    %c0_64 = arith.constant 0 : index
    %c6 = arith.constant 6 : index
    %62 = memref.load %arg0[%c0_64, %c6] : memref<2x8xi32, #tpu.memory_space<smem>>
    %c6_i32 = arith.constant 6 : i32
    %c0_i32_65 = arith.constant 0 : i32
    %c0_i32_66 = arith.constant 0 : i32
    %63 = tpu.memref_slice %arg1[%62, %c0_i32_66] : memref<100x384xf32, #tpu.memory_space<any>> -> memref<1x384xf32, #tpu.memory_space<any>>
    %c48_i32 = arith.constant 48 : i32
    %c0_i32_67 = arith.constant 0 : i32
    %64 = tpu.memref_slice %arg8[%c48_i32, %c0_i32_67] : memref<64x384xf32, #tpu.memory_space<vmem>> -> memref<1x384xf32, #tpu.memory_space<vmem>>
    %65 = tpu.memref_slice %arg10[%c6_i32, %c0_i32_65] : memref<8x8x!tpu.dma_semaphore, #tpu.memory_space<semaphore_mem>> -> memref<1x1x!tpu.dma_semaphore, #tpu.memory_space<semaphore_mem>>
    %66 = tpu.memref_squeeze %65 : memref<1x1x!tpu.dma_semaphore, #tpu.memory_space<semaphore_mem>> -> memref<!tpu.dma_semaphore, #tpu.memory_space<semaphore_mem>>
    tpu.enqueue_dma source(%63 : memref<1x384xf32, #tpu.memory_space<any>>) target(%64 : memref<1x384xf32, #tpu.memory_space<vmem>>) target_semaphore(%66 : memref<!tpu.dma_semaphore, #tpu.memory_space<semaphore_mem>>)
    %c1_68 = arith.constant 1 : index
    %c6_69 = arith.constant 6 : index
    %67 = memref.load %arg0[%c1_68, %c6_69] : memref<2x8xi32, #tpu.memory_space<smem>>
    %c6_i32_70 = arith.constant 6 : i32
    %c1_i32_71 = arith.constant 1 : i32
    %c0_i32_72 = arith.constant 0 : i32
    %68 = tpu.memref_slice %arg1[%67, %c0_i32_72] : memref<100x384xf32, #tpu.memory_space<any>> -> memref<1x384xf32, #tpu.memory_space<any>>
    %c49_i32 = arith.constant 49 : i32
    %c0_i32_73 = arith.constant 0 : i32
    %69 = tpu.memref_slice %arg8[%c49_i32, %c0_i32_73] : memref<64x384xf32, #tpu.memory_space<vmem>> -> memref<1x384xf32, #tpu.memory_space<vmem>>
    %70 = tpu.memref_slice %arg10[%c6_i32_70, %c1_i32_71] : memref<8x8x!tpu.dma_semaphore, #tpu.memory_space<semaphore_mem>> -> memref<1x1x!tpu.dma_semaphore, #tpu.memory_space<semaphore_mem>>
    %71 = tpu.memref_squeeze %70 : memref<1x1x!tpu.dma_semaphore, #tpu.memory_space<semaphore_mem>> -> memref<!tpu.dma_semaphore, #tpu.memory_space<semaphore_mem>>
    tpu.enqueue_dma source(%68 : memref<1x384xf32, #tpu.memory_space<any>>) target(%69 : memref<1x384xf32, #tpu.memory_space<vmem>>) target_semaphore(%71 : memref<!tpu.dma_semaphore, #tpu.memory_space<semaphore_mem>>)
    %c0_74 = arith.constant 0 : index
    %c7 = arith.constant 7 : index
    %72 = memref.load %arg0[%c0_74, %c7] : memref<2x8xi32, #tpu.memory_space<smem>>
    %c7_i32 = arith.constant 7 : i32
    %c0_i32_75 = arith.constant 0 : i32
    %c0_i32_76 = arith.constant 0 : i32
    %73 = tpu.memref_slice %arg1[%72, %c0_i32_76] : memref<100x384xf32, #tpu.memory_space<any>> -> memref<1x384xf32, #tpu.memory_space<any>>
    %c56_i32 = arith.constant 56 : i32
    %c0_i32_77 = arith.constant 0 : i32
    %74 = tpu.memref_slice %arg8[%c56_i32, %c0_i32_77] : memref<64x384xf32, #tpu.memory_space<vmem>> -> memref<1x384xf32, #tpu.memory_space<vmem>>
    %75 = tpu.memref_slice %arg10[%c7_i32, %c0_i32_75] : memref<8x8x!tpu.dma_semaphore, #tpu.memory_space<semaphore_mem>> -> memref<1x1x!tpu.dma_semaphore, #tpu.memory_space<semaphore_mem>>
    %76 = tpu.memref_squeeze %75 : memref<1x1x!tpu.dma_semaphore, #tpu.memory_space<semaphore_mem>> -> memref<!tpu.dma_semaphore, #tpu.memory_space<semaphore_mem>>
    tpu.enqueue_dma source(%73 : memref<1x384xf32, #tpu.memory_space<any>>) target(%74 : memref<1x384xf32, #tpu.memory_space<vmem>>) target_semaphore(%76 : memref<!tpu.dma_semaphore, #tpu.memory_space<semaphore_mem>>)
    %c1_78 = arith.constant 1 : index
    %c7_79 = arith.constant 7 : index
    %77 = memref.load %arg0[%c1_78, %c7_79] : memref<2x8xi32, #tpu.memory_space<smem>>
    %c7_i32_80 = arith.constant 7 : i32
    %c1_i32_81 = arith.constant 1 : i32
    %c0_i32_82 = arith.constant 0 : i32
    %78 = tpu.memref_slice %arg1[%77, %c0_i32_82] : memref<100x384xf32, #tpu.memory_space<any>> -> memref<1x384xf32, #tpu.memory_space<any>>
    %c57_i32 = arith.constant 57 : i32
    %c0_i32_83 = arith.constant 0 : i32
    %79 = tpu.memref_slice %arg8[%c57_i32, %c0_i32_83] : memref<64x384xf32, #tpu.memory_space<vmem>> -> memref<1x384xf32, #tpu.memory_space<vmem>>
    %80 = tpu.memref_slice %arg10[%c7_i32_80, %c1_i32_81] : memref<8x8x!tpu.dma_semaphore, #tpu.memory_space<semaphore_mem>> -> memref<1x1x!tpu.dma_semaphore, #tpu.memory_space<semaphore_mem>>
    %81 = tpu.memref_squeeze %80 : memref<1x1x!tpu.dma_semaphore, #tpu.memory_space<semaphore_mem>> -> memref<!tpu.dma_semaphore, #tpu.memory_space<semaphore_mem>>
    tpu.enqueue_dma source(%78 : memref<1x384xf32, #tpu.memory_space<any>>) target(%79 : memref<1x384xf32, #tpu.memory_space<vmem>>) target_semaphore(%81 : memref<!tpu.dma_semaphore, #tpu.memory_space<semaphore_mem>>)
    %c0_i32_84 = arith.constant 0 : i32
    %c0_i32_85 = arith.constant 0 : i32
    %c0_i32_86 = arith.constant 0 : i32
    %82 = tpu.memref_slice %arg1[%2, %c0_i32_86] : memref<100x384xf32, #tpu.memory_space<any>> -> memref<1x384xf32, #tpu.memory_space<any>>
    %c0_i32_87 = arith.constant 0 : i32
    %c0_i32_88 = arith.constant 0 : i32
    %83 = tpu.memref_slice %arg8[%c0_i32_87, %c0_i32_88] : memref<64x384xf32, #tpu.memory_space<vmem>> -> memref<1x384xf32, #tpu.memory_space<vmem>>
    %84 = tpu.memref_slice %arg10[%c0_i32_84, %c0_i32_85] : memref<8x8x!tpu.dma_semaphore, #tpu.memory_space<semaphore_mem>> -> memref<1x1x!tpu.dma_semaphore, #tpu.memory_space<semaphore_mem>>
    %85 = tpu.memref_squeeze %84 : memref<1x1x!tpu.dma_semaphore, #tpu.memory_space<semaphore_mem>> -> memref<!tpu.dma_semaphore, #tpu.memory_space<semaphore_mem>>
    tpu.wait_dma2 semaphore(%85 : memref<!tpu.dma_semaphore, #tpu.memory_space<semaphore_mem>>) src(%82 : memref<1x384xf32, #tpu.memory_space<any>>) dst(%83 : memref<1x384xf32, #tpu.memory_space<vmem>>)
    %c0_i32_89 = arith.constant 0 : i32
    %c1_i32_90 = arith.constant 1 : i32
    %c0_i32_91 = arith.constant 0 : i32
    %86 = tpu.memref_slice %arg1[%7, %c0_i32_91] : memref<100x384xf32, #tpu.memory_space<any>> -> memref<1x384xf32, #tpu.memory_space<any>>
    %c1_i32_92 = arith.constant 1 : i32
    %c0_i32_93 = arith.constant 0 : i32
    %87 = tpu.memref_slice %arg8[%c1_i32_92, %c0_i32_93] : memref<64x384xf32, #tpu.memory_space<vmem>> -> memref<1x384xf32, #tpu.memory_space<vmem>>
    %88 = tpu.memref_slice %arg10[%c0_i32_89, %c1_i32_90] : memref<8x8x!tpu.dma_semaphore, #tpu.memory_space<semaphore_mem>> -> memref<1x1x!tpu.dma_semaphore, #tpu.memory_space<semaphore_mem>>
    %89 = tpu.memref_squeeze %88 : memref<1x1x!tpu.dma_semaphore, #tpu.memory_space<semaphore_mem>> -> memref<!tpu.dma_semaphore, #tpu.memory_space<semaphore_mem>>
    tpu.wait_dma2 semaphore(%89 : memref<!tpu.dma_semaphore, #tpu.memory_space<semaphore_mem>>) src(%86 : memref<1x384xf32, #tpu.memory_space<any>>) dst(%87 : memref<1x384xf32, #tpu.memory_space<vmem>>)
    %c1_i32_94 = arith.constant 1 : i32
    %c0_i32_95 = arith.constant 0 : i32
    %c0_i32_96 = arith.constant 0 : i32
    %90 = tpu.memref_slice %arg1[%12, %c0_i32_96] : memref<100x384xf32, #tpu.memory_space<any>> -> memref<1x384xf32, #tpu.memory_space<any>>
    %c8_i32_97 = arith.constant 8 : i32
    %c0_i32_98 = arith.constant 0 : i32
    %91 = tpu.memref_slice %arg8[%c8_i32_97, %c0_i32_98] : memref<64x384xf32, #tpu.memory_space<vmem>> -> memref<1x384xf32, #tpu.memory_space<vmem>>
    %92 = tpu.memref_slice %arg10[%c1_i32_94, %c0_i32_95] : memref<8x8x!tpu.dma_semaphore, #tpu.memory_space<semaphore_mem>> -> memref<1x1x!tpu.dma_semaphore, #tpu.memory_space<semaphore_mem>>
    %93 = tpu.memref_squeeze %92 : memref<1x1x!tpu.dma_semaphore, #tpu.memory_space<semaphore_mem>> -> memref<!tpu.dma_semaphore, #tpu.memory_space<semaphore_mem>>
    tpu.wait_dma2 semaphore(%93 : memref<!tpu.dma_semaphore, #tpu.memory_space<semaphore_mem>>) src(%90 : memref<1x384xf32, #tpu.memory_space<any>>) dst(%91 : memref<1x384xf32, #tpu.memory_space<vmem>>)
    %c1_i32_99 = arith.constant 1 : i32
    %c1_i32_100 = arith.constant 1 : i32
    %c0_i32_101 = arith.constant 0 : i32
    %94 = tpu.memref_slice %arg1[%17, %c0_i32_101] : memref<100x384xf32, #tpu.memory_space<any>> -> memref<1x384xf32, #tpu.memory_space<any>>
    %c9_i32_102 = arith.constant 9 : i32
    %c0_i32_103 = arith.constant 0 : i32
    %95 = tpu.memref_slice %arg8[%c9_i32_102, %c0_i32_103] : memref<64x384xf32, #tpu.memory_space<vmem>> -> memref<1x384xf32, #tpu.memory_space<vmem>>
    %96 = tpu.memref_slice %arg10[%c1_i32_99, %c1_i32_100] : memref<8x8x!tpu.dma_semaphore, #tpu.memory_space<semaphore_mem>> -> memref<1x1x!tpu.dma_semaphore, #tpu.memory_space<semaphore_mem>>
    %97 = tpu.memref_squeeze %96 : memref<1x1x!tpu.dma_semaphore, #tpu.memory_space<semaphore_mem>> -> memref<!tpu.dma_semaphore, #tpu.memory_space<semaphore_mem>>
    tpu.wait_dma2 semaphore(%97 : memref<!tpu.dma_semaphore, #tpu.memory_space<semaphore_mem>>) src(%94 : memref<1x384xf32, #tpu.memory_space<any>>) dst(%95 : memref<1x384xf32, #tpu.memory_space<vmem>>)
    %c2_i32_104 = arith.constant 2 : i32
    %c0_i32_105 = arith.constant 0 : i32
    %c0_i32_106 = arith.constant 0 : i32
    %98 = tpu.memref_slice %arg1[%22, %c0_i32_106] : memref<100x384xf32, #tpu.memory_space<any>> -> memref<1x384xf32, #tpu.memory_space<any>>
    %c16_i32_107 = arith.constant 16 : i32
    %c0_i32_108 = arith.constant 0 : i32
    %99 = tpu.memref_slice %arg8[%c16_i32_107, %c0_i32_108] : memref<64x384xf32, #tpu.memory_space<vmem>> -> memref<1x384xf32, #tpu.memory_space<vmem>>
    %100 = tpu.memref_slice %arg10[%c2_i32_104, %c0_i32_105] : memref<8x8x!tpu.dma_semaphore, #tpu.memory_space<semaphore_mem>> -> memref<1x1x!tpu.dma_semaphore, #tpu.memory_space<semaphore_mem>>
    %101 = tpu.memref_squeeze %100 : memref<1x1x!tpu.dma_semaphore, #tpu.memory_space<semaphore_mem>> -> memref<!tpu.dma_semaphore, #tpu.memory_space<semaphore_mem>>
    tpu.wait_dma2 semaphore(%101 : memref<!tpu.dma_semaphore, #tpu.memory_space<semaphore_mem>>) src(%98 : memref<1x384xf32, #tpu.memory_space<any>>) dst(%99 : memref<1x384xf32, #tpu.memory_space<vmem>>)
    %c2_i32_109 = arith.constant 2 : i32
    %c1_i32_110 = arith.constant 1 : i32
    %c0_i32_111 = arith.constant 0 : i32
    %102 = tpu.memref_slice %arg1[%27, %c0_i32_111] : memref<100x384xf32, #tpu.memory_space<any>> -> memref<1x384xf32, #tpu.memory_space<any>>
    %c17_i32_112 = arith.constant 17 : i32
    %c0_i32_113 = arith.constant 0 : i32
    %103 = tpu.memref_slice %arg8[%c17_i32_112, %c0_i32_113] : memref<64x384xf32, #tpu.memory_space<vmem>> -> memref<1x384xf32, #tpu.memory_space<vmem>>
    %104 = tpu.memref_slice %arg10[%c2_i32_109, %c1_i32_110] : memref<8x8x!tpu.dma_semaphore, #tpu.memory_space<semaphore_mem>> -> memref<1x1x!tpu.dma_semaphore, #tpu.memory_space<semaphore_mem>>
    %105 = tpu.memref_squeeze %104 : memref<1x1x!tpu.dma_semaphore, #tpu.memory_space<semaphore_mem>> -> memref<!tpu.dma_semaphore, #tpu.memory_space<semaphore_mem>>
    tpu.wait_dma2 semaphore(%105 : memref<!tpu.dma_semaphore, #tpu.memory_space<semaphore_mem>>) src(%102 : memref<1x384xf32, #tpu.memory_space<any>>) dst(%103 : memref<1x384xf32, #tpu.memory_space<vmem>>)
    %c3_i32_114 = arith.constant 3 : i32
    %c0_i32_115 = arith.constant 0 : i32
    %c0_i32_116 = arith.constant 0 : i32
    %106 = tpu.memref_slice %arg1[%32, %c0_i32_116] : memref<100x384xf32, #tpu.memory_space<any>> -> memref<1x384xf32, #tpu.memory_space<any>>
    %c24_i32_117 = arith.constant 24 : i32
    %c0_i32_118 = arith.constant 0 : i32
    %107 = tpu.memref_slice %arg8[%c24_i32_117, %c0_i32_118] : memref<64x384xf32, #tpu.memory_space<vmem>> -> memref<1x384xf32, #tpu.memory_space<vmem>>
    %108 = tpu.memref_slice %arg10[%c3_i32_114, %c0_i32_115] : memref<8x8x!tpu.dma_semaphore, #tpu.memory_space<semaphore_mem>> -> memref<1x1x!tpu.dma_semaphore, #tpu.memory_space<semaphore_mem>>
    %109 = tpu.memref_squeeze %108 : memref<1x1x!tpu.dma_semaphore, #tpu.memory_space<semaphore_mem>> -> memref<!tpu.dma_semaphore, #tpu.memory_space<semaphore_mem>>
    tpu.wait_dma2 semaphore(%109 : memref<!tpu.dma_semaphore, #tpu.memory_space<semaphore_mem>>) src(%106 : memref<1x384xf32, #tpu.memory_space<any>>) dst(%107 : memref<1x384xf32, #tpu.memory_space<vmem>>)
    %c3_i32_119 = arith.constant 3 : i32
    %c1_i32_120 = arith.constant 1 : i32
    %c0_i32_121 = arith.constant 0 : i32
    %110 = tpu.memref_slice %arg1[%37, %c0_i32_121] : memref<100x384xf32, #tpu.memory_space<any>> -> memref<1x384xf32, #tpu.memory_space<any>>
    %c25_i32_122 = arith.constant 25 : i32
    %c0_i32_123 = arith.constant 0 : i32
    %111 = tpu.memref_slice %arg8[%c25_i32_122, %c0_i32_123] : memref<64x384xf32, #tpu.memory_space<vmem>> -> memref<1x384xf32, #tpu.memory_space<vmem>>
    %112 = tpu.memref_slice %arg10[%c3_i32_119, %c1_i32_120] : memref<8x8x!tpu.dma_semaphore, #tpu.memory_space<semaphore_mem>> -> memref<1x1x!tpu.dma_semaphore, #tpu.memory_space<semaphore_mem>>
    %113 = tpu.memref_squeeze %112 : memref<1x1x!tpu.dma_semaphore, #tpu.memory_space<semaphore_mem>> -> memref<!tpu.dma_semaphore, #tpu.memory_space<semaphore_mem>>
    tpu.wait_dma2 semaphore(%113 : memref<!tpu.dma_semaphore, #tpu.memory_space<semaphore_mem>>) src(%110 : memref<1x384xf32, #tpu.memory_space<any>>) dst(%111 : memref<1x384xf32, #tpu.memory_space<vmem>>)
    %c4_i32_124 = arith.constant 4 : i32
    %c0_i32_125 = arith.constant 0 : i32
    %c0_i32_126 = arith.constant 0 : i32
    %114 = tpu.memref_slice %arg1[%42, %c0_i32_126] : memref<100x384xf32, #tpu.memory_space<any>> -> memref<1x384xf32, #tpu.memory_space<any>>
    %c32_i32_127 = arith.constant 32 : i32
    %c0_i32_128 = arith.constant 0 : i32
    %115 = tpu.memref_slice %arg8[%c32_i32_127, %c0_i32_128] : memref<64x384xf32, #tpu.memory_space<vmem>> -> memref<1x384xf32, #tpu.memory_space<vmem>>
    %116 = tpu.memref_slice %arg10[%c4_i32_124, %c0_i32_125] : memref<8x8x!tpu.dma_semaphore, #tpu.memory_space<semaphore_mem>> -> memref<1x1x!tpu.dma_semaphore, #tpu.memory_space<semaphore_mem>>
    %117 = tpu.memref_squeeze %116 : memref<1x1x!tpu.dma_semaphore, #tpu.memory_space<semaphore_mem>> -> memref<!tpu.dma_semaphore, #tpu.memory_space<semaphore_mem>>
    tpu.wait_dma2 semaphore(%117 : memref<!tpu.dma_semaphore, #tpu.memory_space<semaphore_mem>>) src(%114 : memref<1x384xf32, #tpu.memory_space<any>>) dst(%115 : memref<1x384xf32, #tpu.memory_space<vmem>>)
    %c4_i32_129 = arith.constant 4 : i32
    %c1_i32_130 = arith.constant 1 : i32
    %c0_i32_131 = arith.constant 0 : i32
    %118 = tpu.memref_slice %arg1[%47, %c0_i32_131] : memref<100x384xf32, #tpu.memory_space<any>> -> memref<1x384xf32, #tpu.memory_space<any>>
    %c33_i32_132 = arith.constant 33 : i32
    %c0_i32_133 = arith.constant 0 : i32
    %119 = tpu.memref_slice %arg8[%c33_i32_132, %c0_i32_133] : memref<64x384xf32, #tpu.memory_space<vmem>> -> memref<1x384xf32, #tpu.memory_space<vmem>>
    %120 = tpu.memref_slice %arg10[%c4_i32_129, %c1_i32_130] : memref<8x8x!tpu.dma_semaphore, #tpu.memory_space<semaphore_mem>> -> memref<1x1x!tpu.dma_semaphore, #tpu.memory_space<semaphore_mem>>
    %121 = tpu.memref_squeeze %120 : memref<1x1x!tpu.dma_semaphore, #tpu.memory_space<semaphore_mem>> -> memref<!tpu.dma_semaphore, #tpu.memory_space<semaphore_mem>>
    tpu.wait_dma2 semaphore(%121 : memref<!tpu.dma_semaphore, #tpu.memory_space<semaphore_mem>>) src(%118 : memref<1x384xf32, #tpu.memory_space<any>>) dst(%119 : memref<1x384xf32, #tpu.memory_space<vmem>>)
    %c5_i32_134 = arith.constant 5 : i32
    %c0_i32_135 = arith.constant 0 : i32
    %c0_i32_136 = arith.constant 0 : i32
    %122 = tpu.memref_slice %arg1[%52, %c0_i32_136] : memref<100x384xf32, #tpu.memory_space<any>> -> memref<1x384xf32, #tpu.memory_space<any>>
    %c40_i32_137 = arith.constant 40 : i32
    %c0_i32_138 = arith.constant 0 : i32
    %123 = tpu.memref_slice %arg8[%c40_i32_137, %c0_i32_138] : memref<64x384xf32, #tpu.memory_space<vmem>> -> memref<1x384xf32, #tpu.memory_space<vmem>>
    %124 = tpu.memref_slice %arg10[%c5_i32_134, %c0_i32_135] : memref<8x8x!tpu.dma_semaphore, #tpu.memory_space<semaphore_mem>> -> memref<1x1x!tpu.dma_semaphore, #tpu.memory_space<semaphore_mem>>
    %125 = tpu.memref_squeeze %124 : memref<1x1x!tpu.dma_semaphore, #tpu.memory_space<semaphore_mem>> -> memref<!tpu.dma_semaphore, #tpu.memory_space<semaphore_mem>>
    tpu.wait_dma2 semaphore(%125 : memref<!tpu.dma_semaphore, #tpu.memory_space<semaphore_mem>>) src(%122 : memref<1x384xf32, #tpu.memory_space<any>>) dst(%123 : memref<1x384xf32, #tpu.memory_space<vmem>>)
    %c5_i32_139 = arith.constant 5 : i32
    %c1_i32_140 = arith.constant 1 : i32
    %c0_i32_141 = arith.constant 0 : i32
    %126 = tpu.memref_slice %arg1[%57, %c0_i32_141] : memref<100x384xf32, #tpu.memory_space<any>> -> memref<1x384xf32, #tpu.memory_space<any>>
    %c41_i32_142 = arith.constant 41 : i32
    %c0_i32_143 = arith.constant 0 : i32
    %127 = tpu.memref_slice %arg8[%c41_i32_142, %c0_i32_143] : memref<64x384xf32, #tpu.memory_space<vmem>> -> memref<1x384xf32, #tpu.memory_space<vmem>>
    %128 = tpu.memref_slice %arg10[%c5_i32_139, %c1_i32_140] : memref<8x8x!tpu.dma_semaphore, #tpu.memory_space<semaphore_mem>> -> memref<1x1x!tpu.dma_semaphore, #tpu.memory_space<semaphore_mem>>
    %129 = tpu.memref_squeeze %128 : memref<1x1x!tpu.dma_semaphore, #tpu.memory_space<semaphore_mem>> -> memref<!tpu.dma_semaphore, #tpu.memory_space<semaphore_mem>>
    tpu.wait_dma2 semaphore(%129 : memref<!tpu.dma_semaphore, #tpu.memory_space<semaphore_mem>>) src(%126 : memref<1x384xf32, #tpu.memory_space<any>>) dst(%127 : memref<1x384xf32, #tpu.memory_space<vmem>>)
    %c6_i32_144 = arith.constant 6 : i32
    %c0_i32_145 = arith.constant 0 : i32
    %c0_i32_146 = arith.constant 0 : i32
    %130 = tpu.memref_slice %arg1[%62, %c0_i32_146] : memref<100x384xf32, #tpu.memory_space<any>> -> memref<1x384xf32, #tpu.memory_space<any>>
    %c48_i32_147 = arith.constant 48 : i32
    %c0_i32_148 = arith.constant 0 : i32
    %131 = tpu.memref_slice %arg8[%c48_i32_147, %c0_i32_148] : memref<64x384xf32, #tpu.memory_space<vmem>> -> memref<1x384xf32, #tpu.memory_space<vmem>>
    %132 = tpu.memref_slice %arg10[%c6_i32_144, %c0_i32_145] : memref<8x8x!tpu.dma_semaphore, #tpu.memory_space<semaphore_mem>> -> memref<1x1x!tpu.dma_semaphore, #tpu.memory_space<semaphore_mem>>
    %133 = tpu.memref_squeeze %132 : memref<1x1x!tpu.dma_semaphore, #tpu.memory_space<semaphore_mem>> -> memref<!tpu.dma_semaphore, #tpu.memory_space<semaphore_mem>>
    tpu.wait_dma2 semaphore(%133 : memref<!tpu.dma_semaphore, #tpu.memory_space<semaphore_mem>>) src(%130 : memref<1x384xf32, #tpu.memory_space<any>>) dst(%131 : memref<1x384xf32, #tpu.memory_space<vmem>>)
    %c6_i32_149 = arith.constant 6 : i32
    %c1_i32_150 = arith.constant 1 : i32
    %c0_i32_151 = arith.constant 0 : i32
    %134 = tpu.memref_slice %arg1[%67, %c0_i32_151] : memref<100x384xf32, #tpu.memory_space<any>> -> memref<1x384xf32, #tpu.memory_space<any>>
    %c49_i32_152 = arith.constant 49 : i32
    %c0_i32_153 = arith.constant 0 : i32
    %135 = tpu.memref_slice %arg8[%c49_i32_152, %c0_i32_153] : memref<64x384xf32, #tpu.memory_space<vmem>> -> memref<1x384xf32, #tpu.memory_space<vmem>>
    %136 = tpu.memref_slice %arg10[%c6_i32_149, %c1_i32_150] : memref<8x8x!tpu.dma_semaphore, #tpu.memory_space<semaphore_mem>> -> memref<1x1x!tpu.dma_semaphore, #tpu.memory_space<semaphore_mem>>
    %137 = tpu.memref_squeeze %136 : memref<1x1x!tpu.dma_semaphore, #tpu.memory_space<semaphore_mem>> -> memref<!tpu.dma_semaphore, #tpu.memory_space<semaphore_mem>>
    tpu.wait_dma2 semaphore(%137 : memref<!tpu.dma_semaphore, #tpu.memory_space<semaphore_mem>>) src(%134 : memref<1x384xf32, #tpu.memory_space<any>>) dst(%135 : memref<1x384xf32, #tpu.memory_space<vmem>>)
    %c7_i32_154 = arith.constant 7 : i32
    %c0_i32_155 = arith.constant 0 : i32
    %c0_i32_156 = arith.constant 0 : i32
    %138 = tpu.memref_slice %arg1[%72, %c0_i32_156] : memref<100x384xf32, #tpu.memory_space<any>> -> memref<1x384xf32, #tpu.memory_space<any>>
    %c56_i32_157 = arith.constant 56 : i32
    %c0_i32_158 = arith.constant 0 : i32
    %139 = tpu.memref_slice %arg8[%c56_i32_157, %c0_i32_158] : memref<64x384xf32, #tpu.memory_space<vmem>> -> memref<1x384xf32, #tpu.memory_space<vmem>>
    %140 = tpu.memref_slice %arg10[%c7_i32_154, %c0_i32_155] : memref<8x8x!tpu.dma_semaphore, #tpu.memory_space<semaphore_mem>> -> memref<1x1x!tpu.dma_semaphore, #tpu.memory_space<semaphore_mem>>
    %141 = tpu.memref_squeeze %140 : memref<1x1x!tpu.dma_semaphore, #tpu.memory_space<semaphore_mem>> -> memref<!tpu.dma_semaphore, #tpu.memory_space<semaphore_mem>>
    tpu.wait_dma2 semaphore(%141 : memref<!tpu.dma_semaphore, #tpu.memory_space<semaphore_mem>>) src(%138 : memref<1x384xf32, #tpu.memory_space<any>>) dst(%139 : memref<1x384xf32, #tpu.memory_space<vmem>>)
    %c7_i32_159 = arith.constant 7 : i32
    %c1_i32_160 = arith.constant 1 : i32
    %c0_i32_161 = arith.constant 0 : i32
    %142 = tpu.memref_slice %arg1[%77, %c0_i32_161] : memref<100x384xf32, #tpu.memory_space<any>> -> memref<1x384xf32, #tpu.memory_space<any>>
    %c57_i32_162 = arith.constant 57 : i32
    %c0_i32_163 = arith.constant 0 : i32
    %143 = tpu.memref_slice %arg8[%c57_i32_162, %c0_i32_163] : memref<64x384xf32, #tpu.memory_space<vmem>> -> memref<1x384xf32, #tpu.memory_space<vmem>>
    %144 = tpu.memref_slice %arg10[%c7_i32_159, %c1_i32_160] : memref<8x8x!tpu.dma_semaphore, #tpu.memory_space<semaphore_mem>> -> memref<1x1x!tpu.dma_semaphore, #tpu.memory_space<semaphore_mem>>
    %145 = tpu.memref_squeeze %144 : memref<1x1x!tpu.dma_semaphore, #tpu.memory_space<semaphore_mem>> -> memref<!tpu.dma_semaphore, #tpu.memory_space<semaphore_mem>>
    tpu.wait_dma2 semaphore(%145 : memref<!tpu.dma_semaphore, #tpu.memory_space<semaphore_mem>>) src(%142 : memref<1x384xf32, #tpu.memory_space<any>>) dst(%143 : memref<1x384xf32, #tpu.memory_space<vmem>>)
    %c0_164 = arith.constant 0 : index
    %c0_165 = arith.constant 0 : index
    %146 = vector.load %arg8[%c0_164, %c0_165] : memref<64x384xf32, #tpu.memory_space<vmem>>, vector<64x384xf32>
    %c0_166 = arith.constant 0 : index
    %c0_167 = arith.constant 0 : index
    %147 = vector.load %arg2[%c0_166, %c0_167] : memref<384x128xf32, #tpu.memory_space<vmem>>, vector<384x128xf32>
    %cst_168 = arith.constant dense<0.000000e+00> : vector<64x128xf32>
    %148 = tpu.matmul %146, %147, %cst_168 {dimension_numbers = #tpu.dot_dimension_numbers<[1], [0], [0], [1], [0, 0, 1, 1], [], []>} : vector<64x384xf32>, vector<384x128xf32>, vector<64x128xf32> -> vector<64x128xf32>
    %c0_169 = arith.constant 0 : index
    %c0_170 = arith.constant 0 : index
    %149 = vector.load %arg4[%c0_169, %c0_170] : memref<1x128xf32, #tpu.memory_space<vmem>>, vector<1x128xf32>
    %150 = vector.broadcast %149 : vector<1x128xf32> to vector<64x128xf32>
    %151 = arith.addf %148, %150 : vector<64x128xf32>
    %152 = vector.shape_cast %151 : vector<64x128xf32> to vector<8x8x128xf32>
    %c0_171 = arith.constant 0 : index
    %c0_172 = arith.constant 0 : index
    %c0_173 = arith.constant 0 : index
    %153 = vector.load %arg9[%c0_171, %c0_172, %c0_173] : memref<8x8x128xf32, #tpu.memory_space<vmem>>, vector<8x8x128xf32>
    tpu.vector_store %arg9[%c0_171, %c0_172, %c0_173], %152 {strides = array<i32>} : memref<8x8x128xf32, #tpu.memory_space<vmem>>, vector<8x8x128xf32>,
    %c0_174 = arith.constant 0 : index
    %c0_175 = arith.constant 0 : index
    %154 = vector.load %arg3[%c0_174, %c0_175] : memref<128x128xf32, #tpu.memory_space<vmem>>, vector<128x128xf32>
    %cst_176 = arith.constant 0.000000e+00 : f32
    %155 = vector.broadcast %cst_176 : f32 to vector<8x128xf32>
    %c0_i32_177 = arith.constant 0 : i32
    %156 = arith.index_cast %c0_i32_177 : i32 to index
    %c0_178 = arith.constant 0 : index
    %c0_179 = arith.constant 0 : index
    %157 = vector.load %arg9[%156, %c0_178, %c0_179] : memref<8x8x128xf32, #tpu.memory_space<vmem>>, vector<1x8x128xf32>
    %158 = vector.shape_cast %157 : vector<1x8x128xf32> to vector<8x128xf32>
    %cst_180 = arith.constant dense<0.000000e+00> : vector<8x128xf32>
    %159 = tpu.matmul %155, %154, %cst_180 {dimension_numbers = #tpu.dot_dimension_numbers<[1], [0], [0], [1], [0, 0, 1, 1], [], []>} : vector<8x128xf32>, vector<128x128xf32>, vector<8x128xf32> -> vector<8x128xf32>
    %160 = arith.addf %158, %159 : vector<8x128xf32>
    %161 = math.tanh %160 : vector<8x128xf32>
    %c1_i32_181 = arith.constant 1 : i32
    %162 = arith.index_cast %c1_i32_181 : i32 to index
    %c0_182 = arith.constant 0 : index
    %c0_183 = arith.constant 0 : index
    %163 = vector.load %arg9[%162, %c0_182, %c0_183] : memref<8x8x128xf32, #tpu.memory_space<vmem>>, vector<1x8x128xf32>
    %164 = vector.shape_cast %163 : vector<1x8x128xf32> to vector<8x128xf32>
    %cst_184 = arith.constant dense<0.000000e+00> : vector<8x128xf32>
    %165 = tpu.matmul %161, %154, %cst_184 {dimension_numbers = #tpu.dot_dimension_numbers<[1], [0], [0], [1], [0, 0, 1, 1], [], []>} : vector<8x128xf32>, vector<128x128xf32>, vector<8x128xf32> -> vector<8x128xf32>
    %166 = arith.addf %164, %165 : vector<8x128xf32>
    %167 = math.tanh %166 : vector<8x128xf32>
    %c2_i32_185 = arith.constant 2 : i32
    %168 = arith.index_cast %c2_i32_185 : i32 to index
    %c0_186 = arith.constant 0 : index
    %c0_187 = arith.constant 0 : index
    %169 = vector.load %arg9[%168, %c0_186, %c0_187] : memref<8x8x128xf32, #tpu.memory_space<vmem>>, vector<1x8x128xf32>
    %170 = vector.shape_cast %169 : vector<1x8x128xf32> to vector<8x128xf32>
    %cst_188 = arith.constant dense<0.000000e+00> : vector<8x128xf32>
    %171 = tpu.matmul %167, %154, %cst_188 {dimension_numbers = #tpu.dot_dimension_numbers<[1], [0], [0], [1], [0, 0, 1, 1], [], []>} : vector<8x128xf32>, vector<128x128xf32>, vector<8x128xf32> -> vector<8x128xf32>
    %172 = arith.addf %170, %171 : vector<8x128xf32>
    %173 = math.tanh %172 : vector<8x128xf32>
    %c3_i32_189 = arith.constant 3 : i32
    %174 = arith.index_cast %c3_i32_189 : i32 to index
    %c0_190 = arith.constant 0 : index
    %c0_191 = arith.constant 0 : index
    %175 = vector.load %arg9[%174, %c0_190, %c0_191] : memref<8x8x128xf32, #tpu.memory_space<vmem>>, vector<1x8x128xf32>
    %176 = vector.shape_cast %175 : vector<1x8x128xf32> to vector<8x128xf32>
    %cst_192 = arith.constant dense<0.000000e+00> : vector<8x128xf32>
    %177 = tpu.matmul %173, %154, %cst_192 {dimension_numbers = #tpu.dot_dimension_numbers<[1], [0], [0], [1], [0, 0, 1, 1], [], []>} : vector<8x128xf32>, vector<128x128xf32>, vector<8x128xf32> -> vector<8x128xf32>
    %178 = arith.addf %176, %177 : vector<8x128xf32>
    %179 = math.tanh %178 : vector<8x128xf32>
    %c4_i32_193 = arith.constant 4 : i32
    %180 = arith.index_cast %c4_i32_193 : i32 to index
    %c0_194 = arith.constant 0 : index
    %c0_195 = arith.constant 0 : index
    %181 = vector.load %arg9[%180, %c0_194, %c0_195] : memref<8x8x128xf32, #tpu.memory_space<vmem>>, vector<1x8x128xf32>
    %182 = vector.shape_cast %181 : vector<1x8x128xf32> to vector<8x128xf32>
    %cst_196 = arith.constant dense<0.000000e+00> : vector<8x128xf32>
    %183 = tpu.matmul %179, %154, %cst_196 {dimension_numbers = #tpu.dot_dimension_numbers<[1], [0], [0], [1], [0, 0, 1, 1], [], []>} : vector<8x128xf32>, vector<128x128xf32>, vector<8x128xf32> -> vector<8x128xf32>
    %184 = arith.addf %182, %183 : vector<8x128xf32>
    %185 = math.tanh %184 : vector<8x128xf32>
    %c5_i32_197 = arith.constant 5 : i32
    %186 = arith.index_cast %c5_i32_197 : i32 to index
    %c0_198 = arith.constant 0 : index
    %c0_199 = arith.constant 0 : index
    %187 = vector.load %arg9[%186, %c0_198, %c0_199] : memref<8x8x128xf32, #tpu.memory_space<vmem>>, vector<1x8x128xf32>
    %188 = vector.shape_cast %187 : vector<1x8x128xf32> to vector<8x128xf32>
    %cst_200 = arith.constant dense<0.000000e+00> : vector<8x128xf32>
    %189 = tpu.matmul %185, %154, %cst_200 {dimension_numbers = #tpu.dot_dimension_numbers<[1], [0], [0], [1], [0, 0, 1, 1], [], []>} : vector<8x128xf32>, vector<128x128xf32>, vector<8x128xf32> -> vector<8x128xf32>
    %190 = arith.addf %188, %189 : vector<8x128xf32>
    %191 = math.tanh %190 : vector<8x128xf32>
    %c6_i32_201 = arith.constant 6 : i32
    %192 = arith.index_cast %c6_i32_201 : i32 to index
    %c0_202 = arith.constant 0 : index
    %c0_203 = arith.constant 0 : index
    %193 = vector.load %arg9[%192, %c0_202, %c0_203] : memref<8x8x128xf32, #tpu.memory_space<vmem>>, vector<1x8x128xf32>
    %194 = vector.shape_cast %193 : vector<1x8x128xf32> to vector<8x128xf32>
    %cst_204 = arith.constant dense<0.000000e+00> : vector<8x128xf32>
    %195 = tpu.matmul %191, %154, %cst_204 {dimension_numbers = #tpu.dot_dimension_numbers<[1], [0], [0], [1], [0, 0, 1, 1], [], []>} : vector<8x128xf32>, vector<128x128xf32>, vector<8x128xf32> -> vector<8x128xf32>
    %196 = arith.addf %194, %195 : vector<8x128xf32>
    %197 = math.tanh %196 : vector<8x128xf32>
    %c7_i32_205 = arith.constant 7 : i32
    %198 = arith.index_cast %c7_i32_205 : i32 to index
    %c0_206 = arith.constant 0 : index
    %c0_207 = arith.constant 0 : index
    %199 = vector.load %arg9[%198, %c0_206, %c0_207] : memref<8x8x128xf32, #tpu.memory_space<vmem>>, vector<1x8x128xf32>
    %200 = vector.shape_cast %199 : vector<1x8x128xf32> to vector<8x128xf32>
    %cst_208 = arith.constant dense<0.000000e+00> : vector<8x128xf32>
    %201 = tpu.matmul %197, %154, %cst_208 {dimension_numbers = #tpu.dot_dimension_numbers<[1], [0], [0], [1], [0, 0, 1, 1], [], []>} : vector<8x128xf32>, vector<128x128xf32>, vector<8x128xf32> -> vector<8x128xf32>
    %202 = arith.addf %200, %201 : vector<8x128xf32>
    %203 = math.tanh %202 : vector<8x128xf32>
    %c8_i32_209 = arith.constant 8 : i32
    %c0_210 = arith.constant 0 : index
    %c0_211 = arith.constant 0 : index
    %204 = vector.load %arg5[%c0_210, %c0_211] : memref<128x128xf32, #tpu.memory_space<vmem>>, vector<128x128xf32>
    %cst_212 = arith.constant dense<0.000000e+00> : vector<8x128xf32>
    %205 = tpu.matmul %203, %204, %cst_212 {dimension_numbers = #tpu.dot_dimension_numbers<[1], [0], [0], [1], [0, 0, 1, 1], [], []>} : vector<8x128xf32>, vector<128x128xf32>, vector<8x128xf32> -> vector<8x128xf32>
    %c0_213 = arith.constant 0 : index
    %c0_214 = arith.constant 0 : index
    %206 = vector.load %arg6[%c0_213, %c0_214] : memref<1x128xf32, #tpu.memory_space<vmem>>, vector<1x128xf32>
    %207 = vector.broadcast %206 : vector<1x128xf32> to vector<8x128xf32>
    %208 = arith.addf %205, %207 : vector<8x128xf32>
    %c0_215 = arith.constant 0 : index
    %c0_216 = arith.constant 0 : index
    %209 = vector.load %arg7[%c0_215, %c0_216] : memref<8x128xf32, #tpu.memory_space<vmem>>, vector<8x128xf32>
    tpu.vector_store %arg7[%c0_215, %c0_216], %208 {strides = array<i32>} : memref<8x128xf32, #tpu.memory_space<vmem>>, vector<8x128xf32>,
    return
  }
}

</mosaic_0001>

<llo_original>
// kernel: rnn_forward.1
$region0: #{rnn_forward.1}
  #allocation0 [shape = 'u32[]', space=smem, size = 0x4, offset = 0x4, fixed_abs, tag = 'smem constant byte address 0x4 - core index']
  #allocation1 [shape = 'u32[144,128]{1,0:T(1,128)}', space=vmem, size = 0x12000, scoped, tag = 'internal scratch']
  #allocation2 [shape = 'f32[64,384]{1,0:T(8,128)}', space=vmem, size = 0x18000, scoped, tag = 'scratch operand']
  #allocation3 [shape = 'f32[8,8,128]{2,1,0:T(8,128)}', space=vmem, size = 0x8000, scoped, tag = 'scratch operand']
  #allocation4 [shape = 's32[64]{0}', space=sflag, size = 0x100, scoped, tag = 'scratch operand']
  #allocation12 [shape = 's32[]', space=sflag, size = 0x4, offset = 0, fixed_abs, tag = 'sflag constant byte address 0x0 - dummy sync flag']
  #allocation13 [shape = 's32[]', space=sflag, size = 0x4, offset = 0, fixed_abs, tag = 'sflag constant byte address 0x0 - dummy sync flag']
  #allocation14 [shape = 's32[]', space=sflag, size = 0x4, offset = 0, fixed_abs, tag = 'sflag constant byte address 0x0 - dummy sync flag']
  #allocation15 [shape = 's32[]', space=sflag, size = 0x4, offset = 0, fixed_abs, tag = 'sflag constant byte address 0x0 - dummy sync flag']
  #allocation16 [shape = 's32[]', space=sflag, size = 0x4, offset = 0, fixed_abs, tag = 'sflag constant byte address 0x0 - dummy sync flag']
  #allocation17 [shape = 's32[]', space=sflag, size = 0x4, offset = 0, fixed_abs, tag = 'sflag constant byte address 0x0 - dummy sync flag']
  #allocation18 [shape = 's32[]', space=sflag, size = 0x4, offset = 0, fixed_abs, tag = 'sflag constant byte address 0x0 - dummy sync flag']
  #allocation19 [shape = 's32[]', space=sflag, size = 0x4, offset = 0, fixed_abs, tag = 'sflag constant byte address 0x0 - dummy sync flag']
  #allocation20 [shape = 's32[]', space=sflag, size = 0x4, offset = 0, fixed_abs, tag = 'sflag constant byte address 0x0 - dummy sync flag']
  #allocation21 [shape = 's32[]', space=sflag, size = 0x4, offset = 0, fixed_abs, tag = 'sflag constant byte address 0x0 - dummy sync flag']
  #allocation22 [shape = 's32[]', space=sflag, size = 0x4, offset = 0, fixed_abs, tag = 'sflag constant byte address 0x0 - dummy sync flag']
  #allocation23 [shape = 's32[]', space=sflag, size = 0x4, offset = 0, fixed_abs, tag = 'sflag constant byte address 0x0 - dummy sync flag']
  #allocation24 [shape = 's32[]', space=sflag, size = 0x4, offset = 0, fixed_abs, tag = 'sflag constant byte address 0x0 - dummy sync flag']
  #allocation25 [shape = 's32[]', space=sflag, size = 0x4, offset = 0, fixed_abs, tag = 'sflag constant byte address 0x0 - dummy sync flag']
  #allocation26 [shape = 's32[]', space=sflag, size = 0x4, offset = 0, fixed_abs, tag = 'sflag constant byte address 0x0 - dummy sync flag']
  #allocation27 [shape = 's32[]', space=sflag, size = 0x4, offset = 0, fixed_abs, tag = 'sflag constant byte address 0x0 - dummy sync flag']
  %s0 = inlined_call_operand.hbm [shape: s32[2,8], index: 0, kind: input, shape index: {}]
  %s1 = inlined_call_operand.hbm [shape: f32[100,384], index: 1, kind: input, shape index: {}]
  %s2 = inlined_call_operand.hbm [shape: f32[384,128], index: 2, kind: input, shape index: {}]
  %s3 = inlined_call_operand.hbm [shape: f32[128,128], index: 3, kind: input, shape index: {}]
  %s4 = inlined_call_operand.vmem [shape: f32[1,128], index: 4, kind: input, shape index: {}]
  %s5 = inlined_call_operand.hbm [shape: f32[128,128], index: 5, kind: input, shape index: {}]
  %s6 = inlined_call_operand.vmem [shape: f32[1,128], index: 6, kind: input, shape index: {}]
  %s7 = inlined_call_operand.vmem [shape: f32[8,128], index: 7, kind: output, shape index: {}]
  %s8 = sld [smem:[#allocation0]]
  $region50: #{rnn_forward.1} parent=0
    _
  %s10 = ssub.s32 1, %s8
  %s11 = scalar_select 0, %s10, %s8
  $region1: #{rnn_forward.1} parent=0
    #allocation5 [shape = 'u8[1024]{0}', space=smem, size = 0x400, scoped, tag = 'input window, operand 0, single buffered']
    #allocation6 [shape = 's32[1]{0}', space=sflag, size = 0x4, scoped, tag = 'scoped memory for rnn_forward.1']
    #allocation7 [shape = 's32[1]{0}', space=sflag, size = 0x4, scoped, tag = 'scoped memory for rnn_forward.1']
    #allocation8 [shape = 'u8[196608]{0}', space=vmem, size = 0x30000, scoped, tag = 'input window, operand 2, single buffered']
    #allocation9 [shape = 'u8[65536]{0}', space=vmem, size = 0x10000, scoped, tag = 'input window, operand 3, single buffered']
    #allocation10 [shape = 's32[1]{0}', space=sflag, size = 0x4, scoped, tag = 'scoped memory for rnn_forward.1']
    #allocation11 [shape = 'u8[65536]{0}', space=vmem, size = 0x10000, scoped, tag = 'input window, operand 5, single buffered']
    %12 = vsyncpa [#allocation7], 0
    %13 = vsyncpa [#allocation6], 0
    %14 = vsyncpa [#allocation10], 0
    // Predicated region
    $region2: #{rnn_forward.1} parent=1 // pred_check
      _
    $region3: #{rnn_forward.1} parent=1 // pred_check_branch
      %16 = sbr.rel (0) target = $region5
    $region4: #{rnn_forward.1} parent=1 // pred_region
      %s18 = ssub.s32 32, 32
      %19 = vsyncadd [#allocation7], %s18
      %22 = dma.hbm_to_smem %s0, 32, [#allocation5], [#allocation7]
    $region5: #{rnn_forward.1} parent=1 // pred_fallthru
      _
    // Predicated region
    $region6: #{rnn_forward.1} parent=1 // pred_check
      _
    $region7: #{rnn_forward.1} parent=1 // pred_check_branch
      %24 = sbr.rel (0) target = $region9
    $region8: #{rnn_forward.1} parent=1 // pred_region
      %s26 = ssub.s32 6144, 6144
      %27 = vsyncadd [#allocation6], %s26
      %s28 = sshll.u32 [#allocation8], 4
      %s29 = int_to_ptr.vmem [resolvable:$true] %s28
      %34 = dma.hbm_to_vmem [thread:$0]  %s2, 6144, %s29, [#allocation6], 128, 128, 8
    $region9: #{rnn_forward.1} parent=1 // pred_fallthru
      _
    // Predicated region
    $region10: #{rnn_forward.1} parent=1 // pred_check
      _
    $region11: #{rnn_forward.1} parent=1 // pred_check_branch
      %36 = sbr.rel (0) target = $region13
    $region12: #{rnn_forward.1} parent=1 // pred_region
      %s38 = ssub.s32 2048, 2048
      %39 = vsyncadd [#allocation10], %s38
      %s40 = sshll.u32 [#allocation9], 4
      %s41 = int_to_ptr.vmem [resolvable:$true] %s40
      %46 = dma.hbm_to_vmem [thread:$0]  %s3, 2048, %s41, [#allocation10], 128, 128, 8
    $region13: #{rnn_forward.1} parent=1 // pred_fallthru
      _
    // Predicated region
    $region14: #{rnn_forward.1} parent=1 // pred_check
      _
    $region15: #{rnn_forward.1} parent=1 // pred_check_branch
      %48 = sbr.rel (0) target = $region17
    $region16: #{rnn_forward.1} parent=1 // pred_region
      _
    $region17: #{rnn_forward.1} parent=1 // pred_fallthru
      _
    // Predicated region
    $region18: #{rnn_forward.1} parent=1 // pred_check
      _
    $region19: #{rnn_forward.1} parent=1 // pred_check_branch
      %50 = sbr.rel (0) target = $region21
    $region20: #{rnn_forward.1} parent=1 // pred_region
      %s52 = ssub.s32 2048, 2048
      %53 = vsyncadd [#allocation10], %s52
      %s54 = sshll.u32 [#allocation11], 4
      %s55 = int_to_ptr.vmem [resolvable:$true] %s54
      %60 = dma.hbm_to_vmem [thread:$0]  %s5, 2048, %s55, [#allocation10], 128, 128, 8
    $region21: #{rnn_forward.1} parent=1 // pred_fallthru
      _
    // Predicated region
    $region22: #{rnn_forward.1} parent=1 // pred_check
      _
    $region23: #{rnn_forward.1} parent=1 // pred_check_branch
      %62 = sbr.rel (0) target = $region25
    $region24: #{rnn_forward.1} parent=1 // pred_region
      _
    $region25: #{rnn_forward.1} parent=1 // pred_fallthru
      _
    // Predicated region
    $region26: #{rnn_forward.1} parent=1 // pred_check
      _
    $region27: #{rnn_forward.1} parent=1 // pred_check_branch
      %64 = sbr.rel (0) target = $region29
    $region28: #{rnn_forward.1} parent=1 // pred_region
      %65 = dma.done [#allocation7], 32
    $region29: #{rnn_forward.1} parent=1 // pred_fallthru
      _
    // Predicated region
    $region30: #{rnn_forward.1} parent=1 // pred_check
      _
    $region31: #{rnn_forward.1} parent=1 // pred_check_branch
      %67 = sbr.rel (0) target = $region33
    $region32: #{rnn_forward.1} parent=1 // pred_region
      %68 = dma.done [#allocation6], 6144
    $region33: #{rnn_forward.1} parent=1 // pred_fallthru
      _
    // Predicated region
    $region34: #{rnn_forward.1} parent=1 // pred_check
      _
    $region35: #{rnn_forward.1} parent=1 // pred_check_branch
      %70 = sbr.rel (0) target = $region37
    $region36: #{rnn_forward.1} parent=1 // pred_region
      %71 = dma.done [#allocation10], 2048
    $region37: #{rnn_forward.1} parent=1 // pred_fallthru
      _
    // Predicated region
    $region38: #{rnn_forward.1} parent=1 // pred_check
      _
    $region39: #{rnn_forward.1} parent=1 // pred_check_branch
      %73 = sbr.rel (0) target = $region41
    $region40: #{rnn_forward.1} parent=1 // pred_region
      %74 = dma.done [#allocation10], 2048
    $region41: #{rnn_forward.1} parent=1 // pred_fallthru
      _
    %75 = sfence
    %76 = vst [vmem:[#allocation2] sm:$0xff] 0.0
    %77 = vst [vmem:[#allocation2 + $0x8] sm:$0xff] 0.0
    %78 = vst [vmem:[#allocation2 + $0x10] sm:$0xff] 0.0
    %79 = vst [vmem:[#allocation2 + $0x18] sm:$0xff] 0.0
    %80 = vst [vmem:[#allocation2 + $0x20] sm:$0xff] 0.0
    %81 = vst [vmem:[#allocation2 + $0x28] sm:$0xff] 0.0
    %82 = vst [vmem:[#allocation2 + $0x30] sm:$0xff] 0.0
    %83 = vst [vmem:[#allocation2 + $0x38] sm:$0xff] 0.0
    %84 = vst [vmem:[#allocation2 + $0x40] sm:$0xff] 0.0
    %85 = vst [vmem:[#allocation2 + $0x48] sm:$0xff] 0.0
    %86 = vst [vmem:[#allocation2 + $0x50] sm:$0xff] 0.0
    %87 = vst [vmem:[#allocation2 + $0x58] sm:$0xff] 0.0
    %88 = vst [vmem:[#allocation2 + $0x60] sm:$0xff] 0.0
    %89 = vst [vmem:[#allocation2 + $0x68] sm:$0xff] 0.0
    %90 = vst [vmem:[#allocation2 + $0x70] sm:$0xff] 0.0
    %91 = vst [vmem:[#allocation2 + $0x78] sm:$0xff] 0.0
    %92 = vst [vmem:[#allocation2 + $0x80] sm:$0xff] 0.0
    %93 = vst [vmem:[#allocation2 + $0x88] sm:$0xff] 0.0
    %94 = vst [vmem:[#allocation2 + $0x90] sm:$0xff] 0.0
    %95 = vst [vmem:[#allocation2 + $0x98] sm:$0xff] 0.0
    %96 = vst [vmem:[#allocation2 + $0xa0] sm:$0xff] 0.0
    %97 = vst [vmem:[#allocation2 + $0xa8] sm:$0xff] 0.0
    %98 = vst [vmem:[#allocation2 + $0xb0] sm:$0xff] 0.0
    %99 = vst [vmem:[#allocation2 + $0xb8] sm:$0xff] 0.0
    %s100 = sld [smem:[#allocation5]]
    %s101 = sshrl.u32 %s100, 3
    %s102 = sand.u32 %s100, 7
    %s103 = smul.u32 %s101, 24
    %s104 = sadd.s32 %s102, %s103
    %s105 = smul.addr %s104, 16
    %s106 = scalar_lea.hbm %s1, %s105
    %s108 = sshll.u32 [#allocation2], 4
    %s109 = int_to_ptr.vmem [resolvable:$true] %s108
    %111 = dma.hbm_to_vmem [thread:$0]  %s106, 48, %s109, [#allocation4], 128, 128, 1
    %s112 = sld [smem:[#allocation5 + $0x80]]
    %s113 = sshrl.u32 %s112, 3
    %s114 = sand.u32 %s112, 7
    %s115 = smul.u32 %s113, 24
    %s116 = sadd.s32 %s114, %s115
    %s117 = smul.addr %s116, 16
    %s118 = scalar_lea.hbm %s1, %s117
    %s119 = scalar_lea.vmem [#allocation2], 1
    %s120 = scalar_lea.sflag [#allocation4], 1
    %s122 = sshll.u32 %s119, 4
    %s123 = int_to_ptr.vmem [resolvable:$true] %s122
    %125 = dma.hbm_to_vmem [thread:$0]  %s118, 48, %s123, %s120, 128, 128, 1
    %s126 = sld [smem:[#allocation5 + $0x1]]
    %s127 = sshrl.u32 %s126, 3
    %s128 = sand.u32 %s126, 7
    %s129 = smul.u32 %s127, 24
    %s130 = sadd.s32 %s128, %s129
    %s131 = smul.addr %s130, 16
    %s132 = scalar_lea.hbm %s1, %s131
    %s133 = scalar_lea.vmem [#allocation2], 24
    %s134 = scalar_lea.sflag [#allocation4], 8
    %s136 = sshll.u32 %s133, 4
    %s137 = int_to_ptr.vmem [resolvable:$true] %s136
    %139 = dma.hbm_to_vmem [thread:$0]  %s132, 48, %s137, %s134, 128, 128, 1
    %s140 = sld [smem:[#allocation5 + $0x81]]
    %s141 = sshrl.u32 %s140, 3
    %s142 = sand.u32 %s140, 7
    %s143 = smul.u32 %s141, 24
    %s144 = sadd.s32 %s142, %s143
    %s145 = smul.addr %s144, 16
    %s146 = scalar_lea.hbm %s1, %s145
    %s147 = scalar_lea.vmem [#allocation2], 25
    %s148 = scalar_lea.sflag [#allocation4], 9
    %s150 = sshll.u32 %s147, 4
    %s151 = int_to_ptr.vmem [resolvable:$true] %s150
    %153 = dma.hbm_to_vmem [thread:$0]  %s146, 48, %s151, %s148, 128, 128, 1
    %s154 = sld [smem:[#allocation5 + $0x2]]
    %s155 = sshrl.u32 %s154, 3
    %s156 = sand.u32 %s154, 7
    %s157 = smul.u32 %s155, 24
    %s158 = sadd.s32 %s156, %s157
    %s159 = smul.addr %s158, 16
    %s160 = scalar_lea.hbm %s1, %s159
    %s161 = scalar_lea.vmem [#allocation2], 48
    %s162 = scalar_lea.sflag [#allocation4], 16
    %s164 = sshll.u32 %s161, 4
    %s165 = int_to_ptr.vmem [resolvable:$true] %s164
    %167 = dma.hbm_to_vmem [thread:$0]  %s160, 48, %s165, %s162, 128, 128, 1
    %s168 = sld [smem:[#allocation5 + $0x82]]
    %s169 = sshrl.u32 %s168, 3
    %s170 = sand.u32 %s168, 7
    %s171 = smul.u32 %s169, 24
    %s172 = sadd.s32 %s170, %s171
    %s173 = smul.addr %s172, 16
    %s174 = scalar_lea.hbm %s1, %s173
    %s175 = scalar_lea.vmem [#allocation2], 49
    %s176 = scalar_lea.sflag [#allocation4], 17
    %s178 = sshll.u32 %s175, 4
    %s179 = int_to_ptr.vmem [resolvable:$true] %s178
    %181 = dma.hbm_to_vmem [thread:$0]  %s174, 48, %s179, %s176, 128, 128, 1
    %s182 = sld [smem:[#allocation5 + $0x3]]
    %s183 = sshrl.u32 %s182, 3
    %s184 = sand.u32 %s182, 7
    %s185 = smul.u32 %s183, 24
    %s186 = sadd.s32 %s184, %s185
    %s187 = smul.addr %s186, 16
    %s188 = scalar_lea.hbm %s1, %s187
    %s189 = scalar_lea.vmem [#allocation2], 72
    %s190 = scalar_lea.sflag [#allocation4], 24
    %s192 = sshll.u32 %s189, 4
    %s193 = int_to_ptr.vmem [resolvable:$true] %s192
    %195 = dma.hbm_to_vmem [thread:$0]  %s188, 48, %s193, %s190, 128, 128, 1
    %s196 = sld [smem:[#allocation5 + $0x83]]
    %s197 = sshrl.u32 %s196, 3
    %s198 = sand.u32 %s196, 7
    %s199 = smul.u32 %s197, 24
    %s200 = sadd.s32 %s198, %s199
    %s201 = smul.addr %s200, 16
    %s202 = scalar_lea.hbm %s1, %s201
    %s203 = scalar_lea.vmem [#allocation2], 73
    %s204 = scalar_lea.sflag [#allocation4], 25
    %s206 = sshll.u32 %s203, 4
    %s207 = int_to_ptr.vmem [resolvable:$true] %s206
    %209 = dma.hbm_to_vmem [thread:$0]  %s202, 48, %s207, %s204, 128, 128, 1
    %s210 = sld [smem:[#allocation5 + $0x4]]
    %s211 = sshrl.u32 %s210, 3
    %s212 = sand.u32 %s210, 7
    %s213 = smul.u32 %s211, 24
    %s214 = sadd.s32 %s212, %s213
    %s215 = smul.addr %s214, 16
    %s216 = scalar_lea.hbm %s1, %s215
    %s217 = scalar_lea.vmem [#allocation2], 96
    %s218 = scalar_lea.sflag [#allocation4], 32
    %s220 = sshll.u32 %s217, 4
    %s221 = int_to_ptr.vmem [resolvable:$true] %s220
    %223 = dma.hbm_to_vmem [thread:$0]  %s216, 48, %s221, %s218, 128, 128, 1
    %s224 = sld [smem:[#allocation5 + $0x84]]
    %s225 = sshrl.u32 %s224, 3
    %s226 = sand.u32 %s224, 7
    %s227 = smul.u32 %s225, 24
    %s228 = sadd.s32 %s226, %s227
    %s229 = smul.addr %s228, 16
    %s230 = scalar_lea.hbm %s1, %s229
    %s231 = scalar_lea.vmem [#allocation2], 97
    %s232 = scalar_lea.sflag [#allocation4], 33
    %s234 = sshll.u32 %s231, 4
    %s235 = int_to_ptr.vmem [resolvable:$true] %s234
    %237 = dma.hbm_to_vmem [thread:$0]  %s230, 48, %s235, %s232, 128, 128, 1
    %s238 = sld [smem:[#allocation5 + $0x5]]
    %s239 = sshrl.u32 %s238, 3
    %s240 = sand.u32 %s238, 7
    %s241 = smul.u32 %s239, 24
    %s242 = sadd.s32 %s240, %s241
    %s243 = smul.addr %s242, 16
    %s244 = scalar_lea.hbm %s1, %s243
    %s245 = scalar_lea.vmem [#allocation2], 120
    %s246 = scalar_lea.sflag [#allocation4], 40
    %s248 = sshll.u32 %s245, 4
    %s249 = int_to_ptr.vmem [resolvable:$true] %s248
    %251 = dma.hbm_to_vmem [thread:$0]  %s244, 48, %s249, %s246, 128, 128, 1
    %s252 = sld [smem:[#allocation5 + $0x85]]
    %s253 = sshrl.u32 %s252, 3
    %s254 = sand.u32 %s252, 7
    %s255 = smul.u32 %s253, 24
    %s256 = sadd.s32 %s254, %s255
    %s257 = smul.addr %s256, 16
    %s258 = scalar_lea.hbm %s1, %s257
    %s259 = scalar_lea.vmem [#allocation2], 121
    %s260 = scalar_lea.sflag [#allocation4], 41
    %s262 = sshll.u32 %s259, 4
    %s263 = int_to_ptr.vmem [resolvable:$true] %s262
    %265 = dma.hbm_to_vmem [thread:$0]  %s258, 48, %s263, %s260, 128, 128, 1
    %s266 = sld [smem:[#allocation5 + $0x6]]
    %s267 = sshrl.u32 %s266, 3
    %s268 = sand.u32 %s266, 7
    %s269 = smul.u32 %s267, 24
    %s270 = sadd.s32 %s268, %s269
    %s271 = smul.addr %s270, 16
    %s272 = scalar_lea.hbm %s1, %s271
    %s273 = scalar_lea.vmem [#allocation2], 144
    %s274 = scalar_lea.sflag [#allocation4], 48
    %s276 = sshll.u32 %s273, 4
    %s277 = int_to_ptr.vmem [resolvable:$true] %s276
    %279 = dma.hbm_to_vmem [thread:$0]  %s272, 48, %s277, %s274, 128, 128, 1
    %s280 = sld [smem:[#allocation5 + $0x86]]
    %s281 = sshrl.u32 %s280, 3
    %s282 = sand.u32 %s280, 7
    %s283 = smul.u32 %s281, 24
    %s284 = sadd.s32 %s282, %s283
    %s285 = smul.addr %s284, 16
    %s286 = scalar_lea.hbm %s1, %s285
    %s287 = scalar_lea.vmem [#allocation2], 145
    %s288 = scalar_lea.sflag [#allocation4], 49
    %s290 = sshll.u32 %s287, 4
    %s291 = int_to_ptr.vmem [resolvable:$true] %s290
    %293 = dma.hbm_to_vmem [thread:$0]  %s286, 48, %s291, %s288, 128, 128, 1
    %s294 = sld [smem:[#allocation5 + $0x7]]
    %s295 = sshrl.u32 %s294, 3
    %s296 = sand.u32 %s294, 7
    %s297 = smul.u32 %s295, 24
    %s298 = sadd.s32 %s296, %s297
    %s299 = smul.addr %s298, 16
    %s300 = scalar_lea.hbm %s1, %s299
    %s301 = scalar_lea.vmem [#allocation2], 168
    %s302 = scalar_lea.sflag [#allocation4], 56
    %s304 = sshll.u32 %s301, 4
    %s305 = int_to_ptr.vmem [resolvable:$true] %s304
    %307 = dma.hbm_to_vmem [thread:$0]  %s300, 48, %s305, %s302, 128, 128, 1
    %s308 = sld [smem:[#allocation5 + $0x87]]
    %s309 = sshrl.u32 %s308, 3
    %s310 = sand.u32 %s308, 7
    %s311 = smul.u32 %s309, 24
    %s312 = sadd.s32 %s310, %s311
    %s313 = smul.addr %s312, 16
    %s314 = scalar_lea.hbm %s1, %s313
    %s315 = scalar_lea.vmem [#allocation2], 169
    %s316 = scalar_lea.sflag [#allocation4], 57
    %s318 = sshll.u32 %s315, 4
    %s319 = int_to_ptr.vmem [resolvable:$true] %s318
    %321 = dma.hbm_to_vmem [thread:$0]  %s314, 48, %s319, %s316, 128, 128, 1
    %s322 = smul.u32 1, 3
    %s323 = sshll.u32 %s322, 4
    %324 = dma.done [#allocation4], %s323
    %s325 = sshll.u32 %s322, 4
    %326 = dma.done %s120, %s325
    %s327 = sshll.u32 %s322, 4
    %328 = dma.done %s134, %s327
    %s329 = sshll.u32 %s322, 4
    %330 = dma.done %s148, %s329
    %s331 = sshll.u32 %s322, 4
    %332 = dma.done %s162, %s331
    %s333 = sshll.u32 %s322, 4
    %334 = dma.done %s176, %s333
    %s335 = sshll.u32 %s322, 4
    %336 = dma.done %s190, %s335
    %s337 = sshll.u32 %s322, 4
    %338 = dma.done %s204, %s337
    %s339 = sshll.u32 %s322, 4
    %340 = dma.done %s218, %s339
    %s341 = sshll.u32 %s322, 4
    %342 = dma.done %s232, %s341
    %s343 = sshll.u32 %s322, 4
    %344 = dma.done %s246, %s343
    %s345 = sshll.u32 %s322, 4
    %346 = dma.done %s260, %s345
    %s347 = sshll.u32 %s322, 4
    %348 = dma.done %s274, %s347
    %s349 = sshll.u32 %s322, 4
    %350 = dma.done %s288, %s349
    %s351 = sshll.u32 %s322, 4
    %352 = dma.done %s302, %s351
    %s353 = sshll.u32 %s322, 4
    %354 = dma.done %s316, %s353
    %v355 = vld [vmem:[#allocation2] sm:$0xff]
    %v356 = vld [vmem:[#allocation2 + $0x8] sm:$0xff]
    %v357 = vld [vmem:[#allocation2 + $0x10] sm:$0xff]
    %v358 = vld [vmem:[#allocation2 + $0x18] sm:$0xff]
    %v359 = vld [vmem:[#allocation2 + $0x20] sm:$0xff]
    %v360 = vld [vmem:[#allocation2 + $0x28] sm:$0xff]
    %v361 = vld [vmem:[#allocation2 + $0x30] sm:$0xff]
    %v362 = vld [vmem:[#allocation2 + $0x38] sm:$0xff]
    %v363 = vld [vmem:[#allocation2 + $0x40] sm:$0xff]
    %v364 = vld [vmem:[#allocation2 + $0x48] sm:$0xff]
    %v365 = vld [vmem:[#allocation2 + $0x50] sm:$0xff]
    %v366 = vld [vmem:[#allocation2 + $0x58] sm:$0xff]
    %v367 = vld [vmem:[#allocation2 + $0x60] sm:$0xff]
    %v368 = vld [vmem:[#allocation2 + $0x68] sm:$0xff]
    %v369 = vld [vmem:[#allocation2 + $0x70] sm:$0xff]
    %v370 = vld [vmem:[#allocation2 + $0x78] sm:$0xff]
    %v371 = vld [vmem:[#allocation2 + $0x80] sm:$0xff]
    %v372 = vld [vmem:[#allocation2 + $0x88] sm:$0xff]
    %v373 = vld [vmem:[#allocation2 + $0x90] sm:$0xff]
    %v374 = vld [vmem:[#allocation2 + $0x98] sm:$0xff]
    %v375 = vld [vmem:[#allocation2 + $0xa0] sm:$0xff]
    %v376 = vld [vmem:[#allocation2 + $0xa8] sm:$0xff]
    %v377 = vld [vmem:[#allocation2 + $0xb0] sm:$0xff]
    %v378 = vld [vmem:[#allocation2 + $0xb8] sm:$0xff]
    %v379 = vld [vmem:[#allocation8] sm:$0xff]
    %v380 = vld [vmem:[#allocation8 + $0x8] sm:$0xff]
    %v381 = vld [vmem:[#allocation8 + $0x10] sm:$0xff]
    %v382 = vld [vmem:[#allocation8 + $0x18] sm:$0xff]
    %v383 = vld [vmem:[#allocation8 + $0x20] sm:$0xff]
    %v384 = vld [vmem:[#allocation8 + $0x28] sm:$0xff]
    %v385 = vld [vmem:[#allocation8 + $0x30] sm:$0xff]
    %v386 = vld [vmem:[#allocation8 + $0x38] sm:$0xff]
    %v387 = vld [vmem:[#allocation8 + $0x40] sm:$0xff]
    %v388 = vld [vmem:[#allocation8 + $0x48] sm:$0xff]
    %v389 = vld [vmem:[#allocation8 + $0x50] sm:$0xff]
    %v390 = vld [vmem:[#allocation8 + $0x58] sm:$0xff]
    %v391 = vld [vmem:[#allocation8 + $0x60] sm:$0xff]
    %v392 = vld [vmem:[#allocation8 + $0x68] sm:$0xff]
    %v393 = vld [vmem:[#allocation8 + $0x70] sm:$0xff]
    %v394 = vld [vmem:[#allocation8 + $0x78] sm:$0xff]
    %v395 = vld [vmem:[#allocation8 + $0x80] sm:$0xff]
    %v396 = vld [vmem:[#allocation8 + $0x88] sm:$0xff]
    %v397 = vld [vmem:[#allocation8 + $0x90] sm:$0xff]
    %v398 = vld [vmem:[#allocation8 + $0x98] sm:$0xff]
    %v399 = vld [vmem:[#allocation8 + $0xa0] sm:$0xff]
    %v400 = vld [vmem:[#allocation8 + $0xa8] sm:$0xff]
    %v401 = vld [vmem:[#allocation8 + $0xb0] sm:$0xff]
    %v402 = vld [vmem:[#allocation8 + $0xb8] sm:$0xff]
    %v403 = vld [vmem:[#allocation8 + $0xc0] sm:$0xff]
    %v404 = vld [vmem:[#allocation8 + $0xc8] sm:$0xff]
    %v405 = vld [vmem:[#allocation8 + $0xd0] sm:$0xff]
    %v406 = vld [vmem:[#allocation8 + $0xd8] sm:$0xff]
    %v407 = vld [vmem:[#allocation8 + $0xe0] sm:$0xff]
    %v408 = vld [vmem:[#allocation8 + $0xe8] sm:$0xff]
    %v409 = vld [vmem:[#allocation8 + $0xf0] sm:$0xff]
    %v410 = vld [vmem:[#allocation8 + $0xf8] sm:$0xff]
    %v411 = vld [vmem:[#allocation8 + $0x100] sm:$0xff]
    %v412 = vld [vmem:[#allocation8 + $0x108] sm:$0xff]
    %v413 = vld [vmem:[#allocation8 + $0x110] sm:$0xff]
    %v414 = vld [vmem:[#allocation8 + $0x118] sm:$0xff]
    %v415 = vld [vmem:[#allocation8 + $0x120] sm:$0xff]
    %v416 = vld [vmem:[#allocation8 + $0x128] sm:$0xff]
    %v417 = vld [vmem:[#allocation8 + $0x130] sm:$0xff]
    %v418 = vld [vmem:[#allocation8 + $0x138] sm:$0xff]
    %v419 = vld [vmem:[#allocation8 + $0x140] sm:$0xff]
    %v420 = vld [vmem:[#allocation8 + $0x148] sm:$0xff]
    %v421 = vld [vmem:[#allocation8 + $0x150] sm:$0xff]
    %v422 = vld [vmem:[#allocation8 + $0x158] sm:$0xff]
    %v423 = vld [vmem:[#allocation8 + $0x160] sm:$0xff]
    %v424 = vld [vmem:[#allocation8 + $0x168] sm:$0xff]
    %v425 = vld [vmem:[#allocation8 + $0x170] sm:$0xff]
    %v426 = vld [vmem:[#allocation8 + $0x178] sm:$0xff]
    %v427 = vld [vmem:[%s4] sm:$0x1]
    %v429 = vlaneseq
    %v430 = vshrl.u32 %v429, 7
    %v431 = vsub.s32 0, %v430
    %v432 = vrot.slane %v427, %v431
    %434 = vmatprep.subr.mxu0 0.0
    %435 = vmatpush1.msra.mxu0 %v379
    %436 = vmatprep.subr.mxu0 0.0
    %437 = vmatpush1.msra.mxu0 %v380
    %438 = vmatprep.subr.mxu0 0.0
    %439 = vmatpush1.msra.mxu0 %v381
    %440 = vmatprep.subr.mxu0 0.0
    %441 = vmatpush1.msra.mxu0 %v382
    %442 = vmatprep.subr.mxu0 0.0
    %443 = vmatpush1.msra.mxu0 %v383
    %444 = vmatprep.subr.mxu0 0.0
    %445 = vmatpush1.msra.mxu0 %v384
    %446 = vmatprep.subr.mxu0 0.0
    %447 = vmatpush1.msra.mxu0 %v385
    %448 = vmatprep.subr.mxu0 0.0
    %449 = vmatpush1.msra.mxu0 %v386
    %450 = vmatprep.subr.mxu0 0.0
    %451 = vmatpush1.msra.mxu0 %v387
    %452 = vmatprep.subr.mxu0 0.0
    %453 = vmatpush1.msra.mxu0 %v388
    %454 = vmatprep.subr.mxu0 0.0
    %455 = vmatpush1.msra.mxu0 %v389
    %456 = vmatprep.subr.mxu0 0.0
    %457 = vmatpush1.msra.mxu0 %v390
    %458 = vmatprep.subr.mxu0 0.0
    %459 = vmatpush1.msra.mxu0 %v391
    %460 = vmatprep.subr.mxu0 0.0
    %461 = vmatpush1.msra.mxu0 %v392
    %462 = vmatprep.subr.mxu0 0.0
    %463 = vmatpush1.msra.mxu0 %v393
    %464 = vmatprep.subr.mxu0 0.0
    %465 = vmatpush1.msra.mxu0 %v394
    %466 = vmatprep.subr.mxu0 0.0
    %467 = vmatpush1.msra.mxu0 %v395
    %468 = vmatprep.subr.mxu0 0.0
    %469 = vmatpush1.msra.mxu0 %v396
    %470 = vmatprep.subr.mxu0 0.0
    %471 = vmatpush1.msra.mxu0 %v397
    %472 = vmatprep.subr.mxu0 0.0
    %473 = vmatpush1.msra.mxu0 %v398
    %474 = vmatprep.subr.mxu0 0.0
    %475 = vmatpush1.msra.mxu0 %v399
    %476 = vmatprep.subr.mxu0 0.0
    %477 = vmatpush1.msra.mxu0 %v400
    %478 = vmatprep.subr.mxu0 0.0
    %479 = vmatpush1.msra.mxu0 %v401
    %480 = vmatprep.subr.mxu0 0.0
    %481 = vmatpush1.msra.mxu0 %v402
    %482 = vmatprep.subr.mxu0 0.0
    %483 = vmatpush1.msra.mxu0 %v403
    %484 = vmatprep.subr.mxu0 0.0
    %485 = vmatpush1.msra.mxu0 %v404
    %486 = vmatprep.subr.mxu0 0.0
    %487 = vmatpush1.msra.mxu0 %v405
    %488 = vmatprep.subr.mxu0 0.0
    %489 = vmatpush1.msra.mxu0 %v406
    %490 = vmatprep.subr.mxu0 0.0
    %491 = vmatpush1.msra.mxu0 %v407
    %492 = vmatprep.subr.mxu0 0.0
    %493 = vmatpush1.msra.mxu0 %v408
    %494 = vmatprep.subr.mxu0 0.0
    %495 = vmatpush1.msra.mxu0 %v409
    %496 = vmatprep.subr.mxu0 0.0
    %497 = vmatpush1.msra.mxu0 %v410
    %498 = vmatprep.mubr.f32.mxu0 %v356
    %499 = vmatmul.mubr.f32.gmra.mrb[0].mxu0 %v355
    %v500 = vpop.f32.mrb[0].mxu0
    %v501 = vadd.f32 %v432, %v500
    %v502 = vpop.f32.mrb[0].mxu0
    %503 = vmatprep.mubr.f32.mxu0 %v359
    %504 = vmatmul.mubr.f32.gmra.mrb[0].mxu0 %v358
    %v505 = vpop.f32.mrb[0].mxu0
    %v506 = vadd.f32 %v432, %v505
    %v507 = vpop.f32.mrb[0].mxu0
    %508 = vmatprep.mubr.f32.mxu0 %v362
    %509 = vmatmul.mubr.f32.gmra.mrb[0].mxu0 %v361
    %v510 = vpop.f32.mrb[0].mxu0
    %v511 = vadd.f32 %v432, %v510
    %v512 = vpop.f32.mrb[0].mxu0
    %513 = vmatprep.mubr.f32.mxu0 %v365
    %514 = vmatmul.mubr.f32.gmra.mrb[0].mxu0 %v364
    %v515 = vpop.f32.mrb[0].mxu0
    %v516 = vadd.f32 %v432, %v515
    %v517 = vpop.f32.mrb[0].mxu0
    %518 = vmatprep.mubr.f32.mxu0 %v368
    %519 = vmatmul.mubr.f32.gmra.mrb[0].mxu0 %v367
    %v520 = vpop.f32.mrb[0].mxu0
    %v521 = vadd.f32 %v432, %v520
    %v522 = vpop.f32.mrb[0].mxu0
    %523 = vmatprep.mubr.f32.mxu0 %v371
    %524 = vmatmul.mubr.f32.gmra.mrb[0].mxu0 %v370
    %v525 = vpop.f32.mrb[0].mxu0
    %v526 = vadd.f32 %v432, %v525
    %v527 = vpop.f32.mrb[0].mxu0
    %528 = vmatprep.mubr.f32.mxu0 %v374
    %529 = vmatmul.mubr.f32.gmra.mrb[0].mxu0 %v373
    %v530 = vpop.f32.mrb[0].mxu0
    %v531 = vadd.f32 %v432, %v530
    %v532 = vpop.f32.mrb[0].mxu0
    %533 = vmatprep.mubr.f32.mxu0 %v377
    %534 = vmatmul.mubr.f32.gmra.mrb[0].mxu0 %v376
    %v535 = vpop.f32.mrb[0].mxu0
    %v536 = vadd.f32 %v432, %v535
    %v537 = vpop.f32.mrb[0].mxu0
    %538 = vdwg.mxu0
    %539 = vmatprep.subr.mxu0 0.0
    %540 = vmatpush1.msra.mxu0 %v411
    %541 = vmatprep.subr.mxu0 0.0
    %542 = vmatpush1.msra.mxu0 %v412
    %543 = vmatprep.subr.mxu0 0.0
    %544 = vmatpush1.msra.mxu0 %v413
    %545 = vmatprep.subr.mxu0 0.0
    %546 = vmatpush1.msra.mxu0 %v414
    %547 = vmatprep.subr.mxu0 0.0
    %548 = vmatpush1.msra.mxu0 %v415
    %549 = vmatprep.subr.mxu0 0.0
    %550 = vmatpush1.msra.mxu0 %v416
    %551 = vmatprep.subr.mxu0 0.0
    %552 = vmatpush1.msra.mxu0 %v417
    %553 = vmatprep.subr.mxu0 0.0
    %554 = vmatpush1.msra.mxu0 %v418
    %555 = vmatprep.subr.mxu0 0.0
    %556 = vmatpush1.msra.mxu0 %v419
    %557 = vmatprep.subr.mxu0 0.0
    %558 = vmatpush1.msra.mxu0 %v420
    %559 = vmatprep.subr.mxu0 0.0
    %560 = vmatpush1.msra.mxu0 %v421
    %561 = vmatprep.subr.mxu0 0.0
    %562 = vmatpush1.msra.mxu0 %v422
    %563 = vmatprep.subr.mxu0 0.0
    %564 = vmatpush1.msra.mxu0 %v423
    %565 = vmatprep.subr.mxu0 0.0
    %566 = vmatpush1.msra.mxu0 %v424
    %567 = vmatprep.subr.mxu0 0.0
    %568 = vmatpush1.msra.mxu0 %v425
    %569 = vmatprep.subr.mxu0 0.0
    %570 = vmatpush1.msra.mxu0 %v426
    %571 = vmatprep.subr.mxu0 0.0
    %572 = vmatpush1.msra.mxu0 0.0
    %573 = vmatprep.subr.mxu0 0.0
    %574 = vmatpush1.msra.mxu0 0.0
    %575 = vmatprep.subr.mxu0 0.0
    %576 = vmatpush1.msra.mxu0 0.0
    %577 = vmatprep.subr.mxu0 0.0
    %578 = vmatpush1.msra.mxu0 0.0
    %579 = vmatprep.subr.mxu0 0.0
    %580 = vmatpush1.msra.mxu0 0.0
    %581 = vmatprep.subr.mxu0 0.0
    %582 = vmatpush1.msra.mxu0 0.0
    %583 = vmatprep.subr.mxu0 0.0
    %584 = vmatpush1.msra.mxu0 0.0
    %585 = vmatprep.subr.mxu0 0.0
    %586 = vmatpush1.msra.mxu0 0.0
    %587 = vmatprep.subr.mxu0 0.0
    %588 = vmatpush1.msra.mxu0 0.0
    %589 = vmatprep.subr.mxu0 0.0
    %590 = vmatpush1.msra.mxu0 0.0
    %591 = vmatprep.subr.mxu0 0.0
    %592 = vmatpush1.msra.mxu0 0.0
    %593 = vmatprep.subr.mxu0 0.0
    %594 = vmatpush1.msra.mxu0 0.0
    %595 = vmatprep.subr.mxu0 0.0
    %596 = vmatpush1.msra.mxu0 0.0
    %597 = vmatprep.subr.mxu0 0.0
    %598 = vmatpush1.msra.mxu0 0.0
    %599 = vmatprep.subr.mxu0 0.0
    %600 = vmatpush1.msra.mxu0 0.0
    %601 = vmatprep.subr.mxu0 0.0
    %602 = vmatpush1.msra.mxu0 0.0
    %603 = vmatprep.mubr.f32.mxu0 0.0
    %604 = vmatmul.mubr.f32.gmra.mrb[0].mxu0 %v357
    %v605 = vpop.f32.mrb[0].mxu0
    %v606 = vadd.f32 %v501, %v605
    %v607 = vpop.f32.mrb[0].mxu0
    %608 = vmatprep.mubr.f32.mxu0 0.0
    %609 = vmatmul.mubr.f32.gmra.mrb[0].mxu0 %v360
    %v610 = vpop.f32.mrb[0].mxu0
    %v611 = vadd.f32 %v506, %v610
    %v612 = vpop.f32.mrb[0].mxu0
    %613 = vmatprep.mubr.f32.mxu0 0.0
    %614 = vmatmul.mubr.f32.gmra.mrb[0].mxu0 %v363
    %v615 = vpop.f32.mrb[0].mxu0
    %v616 = vadd.f32 %v511, %v615
    %v617 = vpop.f32.mrb[0].mxu0
    %618 = vmatprep.mubr.f32.mxu0 0.0
    %619 = vmatmul.mubr.f32.gmra.mrb[0].mxu0 %v366
    %v620 = vpop.f32.mrb[0].mxu0
    %v621 = vadd.f32 %v516, %v620
    %v622 = vpop.f32.mrb[0].mxu0
    %623 = vmatprep.mubr.f32.mxu0 0.0
    %624 = vmatmul.mubr.f32.gmra.mrb[0].mxu0 %v369
    %v625 = vpop.f32.mrb[0].mxu0
    %v626 = vadd.f32 %v521, %v625
    %v627 = vpop.f32.mrb[0].mxu0
    %628 = vmatprep.mubr.f32.mxu0 0.0
    %629 = vmatmul.mubr.f32.gmra.mrb[0].mxu0 %v372
    %v630 = vpop.f32.mrb[0].mxu0
    %v631 = vadd.f32 %v526, %v630
    %v632 = vpop.f32.mrb[0].mxu0
    %633 = vmatprep.mubr.f32.mxu0 0.0
    %634 = vmatmul.mubr.f32.gmra.mrb[0].mxu0 %v375
    %v635 = vpop.f32.mrb[0].mxu0
    %v636 = vadd.f32 %v531, %v635
    %v637 = vpop.f32.mrb[0].mxu0
    %638 = vmatprep.mubr.f32.mxu0 0.0
    %639 = vmatmul.mubr.f32.gmra.mrb[0].mxu0 %v378
    %v640 = vpop.f32.mrb[0].mxu0
    %v641 = vadd.f32 %v536, %v640
    %v642 = vpop.f32.mrb[0].mxu0
    %643 = vdwg.mxu0
    %644 = vst [vmem:[#allocation3] sm:$0xff] %v606
    %645 = vst [vmem:[#allocation3 + $0x8] sm:$0xff] %v611
    %646 = vst [vmem:[#allocation3 + $0x10] sm:$0xff] %v616
    %647 = vst [vmem:[#allocation3 + $0x18] sm:$0xff] %v621
    %648 = vst [vmem:[#allocation3 + $0x20] sm:$0xff] %v626
    %649 = vst [vmem:[#allocation3 + $0x28] sm:$0xff] %v631
    %650 = vst [vmem:[#allocation3 + $0x30] sm:$0xff] %v636
    %651 = vst [vmem:[#allocation3 + $0x38] sm:$0xff] %v641
    %v652 = vld [vmem:[#allocation9] sm:$0xff]
    %v653 = vld [vmem:[#allocation9 + $0x8] sm:$0xff]
    %v654 = vld [vmem:[#allocation9 + $0x10] sm:$0xff]
    %v655 = vld [vmem:[#allocation9 + $0x18] sm:$0xff]
    %v656 = vld [vmem:[#allocation9 + $0x20] sm:$0xff]
    %v657 = vld [vmem:[#allocation9 + $0x28] sm:$0xff]
    %v658 = vld [vmem:[#allocation9 + $0x30] sm:$0xff]
    %v659 = vld [vmem:[#allocation9 + $0x38] sm:$0xff]
    %v660 = vld [vmem:[#allocation9 + $0x40] sm:$0xff]
    %v661 = vld [vmem:[#allocation9 + $0x48] sm:$0xff]
    %v662 = vld [vmem:[#allocation9 + $0x50] sm:$0xff]
    %v663 = vld [vmem:[#allocation9 + $0x58] sm:$0xff]
    %v664 = vld [vmem:[#allocation9 + $0x60] sm:$0xff]
    %v665 = vld [vmem:[#allocation9 + $0x68] sm:$0xff]
    %v666 = vld [vmem:[#allocation9 + $0x70] sm:$0xff]
    %v667 = vld [vmem:[#allocation9 + $0x78] sm:$0xff]
    %v668 = vld [vmem:[#allocation3] sm:$0xff]
    %669 = vmatprep.subr.mxu0 0.0
    %670 = vmatpush1.msra.mxu0 %v652
    %671 = vmatprep.subr.mxu0 0.0
    %672 = vmatpush1.msra.mxu0 %v653
    %673 = vmatprep.subr.mxu0 0.0
    %674 = vmatpush1.msra.mxu0 %v654
    %675 = vmatprep.subr.mxu0 0.0
    %676 = vmatpush1.msra.mxu0 %v655
    %677 = vmatprep.subr.mxu0 0.0
    %678 = vmatpush1.msra.mxu0 %v656
    %679 = vmatprep.subr.mxu0 0.0
    %680 = vmatpush1.msra.mxu0 %v657
    %681 = vmatprep.subr.mxu0 0.0
    %682 = vmatpush1.msra.mxu0 %v658
    %683 = vmatprep.subr.mxu0 0.0
    %684 = vmatpush1.msra.mxu0 %v659
    %685 = vmatprep.subr.mxu0 0.0
    %686 = vmatpush1.msra.mxu0 %v660
    %687 = vmatprep.subr.mxu0 0.0
    %688 = vmatpush1.msra.mxu0 %v661
    %689 = vmatprep.subr.mxu0 0.0
    %690 = vmatpush1.msra.mxu0 %v662
    %691 = vmatprep.subr.mxu0 0.0
    %692 = vmatpush1.msra.mxu0 %v663
    %693 = vmatprep.subr.mxu0 0.0
    %694 = vmatpush1.msra.mxu0 %v664
    %695 = vmatprep.subr.mxu0 0.0
    %696 = vmatpush1.msra.mxu0 %v665
    %697 = vmatprep.subr.mxu0 0.0
    %698 = vmatpush1.msra.mxu0 %v666
    %699 = vmatprep.subr.mxu0 0.0
    %700 = vmatpush1.msra.mxu0 %v667
    %701 = vmatprep.subr.mxu0 0.0
    %702 = vmatpush1.msra.mxu0 0.0
    %703 = vmatprep.subr.mxu0 0.0
    %704 = vmatpush1.msra.mxu0 0.0
    %705 = vmatprep.subr.mxu0 0.0
    %706 = vmatpush1.msra.mxu0 0.0
    %707 = vmatprep.subr.mxu0 0.0
    %708 = vmatpush1.msra.mxu0 0.0
    %709 = vmatprep.subr.mxu0 0.0
    %710 = vmatpush1.msra.mxu0 0.0
    %711 = vmatprep.subr.mxu0 0.0
    %712 = vmatpush1.msra.mxu0 0.0
    %713 = vmatprep.subr.mxu0 0.0
    %714 = vmatpush1.msra.mxu0 0.0
    %715 = vmatprep.subr.mxu0 0.0
    %716 = vmatpush1.msra.mxu0 0.0
    %717 = vmatprep.subr.mxu0 0.0
    %718 = vmatpush1.msra.mxu0 0.0
    %719 = vmatprep.subr.mxu0 0.0
    %720 = vmatpush1.msra.mxu0 0.0
    %721 = vmatprep.subr.mxu0 0.0
    %722 = vmatpush1.msra.mxu0 0.0
    %723 = vmatprep.subr.mxu0 0.0
    %724 = vmatpush1.msra.mxu0 0.0
    %725 = vmatprep.subr.mxu0 0.0
    %726 = vmatpush1.msra.mxu0 0.0
    %727 = vmatprep.subr.mxu0 0.0
    %728 = vmatpush1.msra.mxu0 0.0
    %729 = vmatprep.subr.mxu0 0.0
    %730 = vmatpush1.msra.mxu0 0.0
    %731 = vmatprep.subr.mxu0 0.0
    %732 = vmatpush1.msra.mxu0 0.0
    %733 = vmatprep.mubr.f32.mxu0 0.0
    %734 = vmatmul.mubr.f32.gmra.mrb[0].mxu0 0.0
    %v735 = vpop.f32.mrb[0].mxu0
    %v736 = vadd.f32 0.0, %v735
    %v737 = vpop.f32.mrb[0].mxu0
    %738 = vdwg.mxu0
    %v739 = vadd.f32 %v668, %v736
    %v740 = vtanh.pop %v739
    %s741 = scalar_lea.vmem [#allocation3], 8
    %v742 = vld [vmem:[%s741] sm:$0xff]
    %743 = vmatprep.subr.mxu0 0.0
    %744 = vmatpush1.msra.mxu0 %v652
    %745 = vmatprep.subr.mxu0 0.0
    %746 = vmatpush1.msra.mxu0 %v653
    %747 = vmatprep.subr.mxu0 0.0
    %748 = vmatpush1.msra.mxu0 %v654
    %749 = vmatprep.subr.mxu0 0.0
    %750 = vmatpush1.msra.mxu0 %v655
    %751 = vmatprep.subr.mxu0 0.0
    %752 = vmatpush1.msra.mxu0 %v656
    %753 = vmatprep.subr.mxu0 0.0
    %754 = vmatpush1.msra.mxu0 %v657
    %755 = vmatprep.subr.mxu0 0.0
    %756 = vmatpush1.msra.mxu0 %v658
    %757 = vmatprep.subr.mxu0 0.0
    %758 = vmatpush1.msra.mxu0 %v659
    %759 = vmatprep.subr.mxu0 0.0
    %760 = vmatpush1.msra.mxu0 %v660
    %761 = vmatprep.subr.mxu0 0.0
    %762 = vmatpush1.msra.mxu0 %v661
    %763 = vmatprep.subr.mxu0 0.0
    %764 = vmatpush1.msra.mxu0 %v662
    %765 = vmatprep.subr.mxu0 0.0
    %766 = vmatpush1.msra.mxu0 %v663
    %767 = vmatprep.subr.mxu0 0.0
    %768 = vmatpush1.msra.mxu0 %v664
    %769 = vmatprep.subr.mxu0 0.0
    %770 = vmatpush1.msra.mxu0 %v665
    %771 = vmatprep.subr.mxu0 0.0
    %772 = vmatpush1.msra.mxu0 %v666
    %773 = vmatprep.subr.mxu0 0.0
    %774 = vmatpush1.msra.mxu0 %v667
    %775 = vmatprep.subr.mxu0 0.0
    %776 = vmatpush1.msra.mxu0 0.0
    %777 = vmatprep.subr.mxu0 0.0
    %778 = vmatpush1.msra.mxu0 0.0
    %779 = vmatprep.subr.mxu0 0.0
    %780 = vmatpush1.msra.mxu0 0.0
    %781 = vmatprep.subr.mxu0 0.0
    %782 = vmatpush1.msra.mxu0 0.0
    %783 = vmatprep.subr.mxu0 0.0
    %784 = vmatpush1.msra.mxu0 0.0
    %785 = vmatprep.subr.mxu0 0.0
    %786 = vmatpush1.msra.mxu0 0.0
    %787 = vmatprep.subr.mxu0 0.0
    %788 = vmatpush1.msra.mxu0 0.0
    %789 = vmatprep.subr.mxu0 0.0
    %790 = vmatpush1.msra.mxu0 0.0
    %791 = vmatprep.subr.mxu0 0.0
    %792 = vmatpush1.msra.mxu0 0.0
    %793 = vmatprep.subr.mxu0 0.0
    %794 = vmatpush1.msra.mxu0 0.0
    %795 = vmatprep.subr.mxu0 0.0
    %796 = vmatpush1.msra.mxu0 0.0
    %797 = vmatprep.subr.mxu0 0.0
    %798 = vmatpush1.msra.mxu0 0.0
    %799 = vmatprep.subr.mxu0 0.0
    %800 = vmatpush1.msra.mxu0 0.0
    %801 = vmatprep.subr.mxu0 0.0
    %802 = vmatpush1.msra.mxu0 0.0
    %803 = vmatprep.subr.mxu0 0.0
    %804 = vmatpush1.msra.mxu0 0.0
    %805 = vmatprep.subr.mxu0 0.0
    %806 = vmatpush1.msra.mxu0 0.0
    %807 = vmatprep.mubr.f32.mxu0 0.0
    %808 = vmatmul.mubr.f32.gmra.mrb[0].mxu0 %v740
    %v809 = vpop.f32.mrb[0].mxu0
    %v810 = vadd.f32 0.0, %v809
    %v811 = vpop.f32.mrb[0].mxu0
    %812 = vdwg.mxu0
    %v813 = vadd.f32 %v742, %v810
    %v814 = vtanh.pop %v813
    %s815 = scalar_lea.vmem [#allocation3], 16
    %v816 = vld [vmem:[%s815] sm:$0xff]
    %817 = vmatprep.subr.mxu0 0.0
    %818 = vmatpush1.msra.mxu0 %v652
    %819 = vmatprep.subr.mxu0 0.0
    %820 = vmatpush1.msra.mxu0 %v653
    %821 = vmatprep.subr.mxu0 0.0
    %822 = vmatpush1.msra.mxu0 %v654
    %823 = vmatprep.subr.mxu0 0.0
    %824 = vmatpush1.msra.mxu0 %v655
    %825 = vmatprep.subr.mxu0 0.0
    %826 = vmatpush1.msra.mxu0 %v656
    %827 = vmatprep.subr.mxu0 0.0
    %828 = vmatpush1.msra.mxu0 %v657
    %829 = vmatprep.subr.mxu0 0.0
    %830 = vmatpush1.msra.mxu0 %v658
    %831 = vmatprep.subr.mxu0 0.0
    %832 = vmatpush1.msra.mxu0 %v659
    %833 = vmatprep.subr.mxu0 0.0
    %834 = vmatpush1.msra.mxu0 %v660
    %835 = vmatprep.subr.mxu0 0.0
    %836 = vmatpush1.msra.mxu0 %v661
    %837 = vmatprep.subr.mxu0 0.0
    %838 = vmatpush1.msra.mxu0 %v662
    %839 = vmatprep.subr.mxu0 0.0
    %840 = vmatpush1.msra.mxu0 %v663
    %841 = vmatprep.subr.mxu0 0.0
    %842 = vmatpush1.msra.mxu0 %v664
    %843 = vmatprep.subr.mxu0 0.0
    %844 = vmatpush1.msra.mxu0 %v665
    %845 = vmatprep.subr.mxu0 0.0
    %846 = vmatpush1.msra.mxu0 %v666
    %847 = vmatprep.subr.mxu0 0.0
    %848 = vmatpush1.msra.mxu0 %v667
    %849 = vmatprep.subr.mxu0 0.0
    %850 = vmatpush1.msra.mxu0 0.0
    %851 = vmatprep.subr.mxu0 0.0
    %852 = vmatpush1.msra.mxu0 0.0
    %853 = vmatprep.subr.mxu0 0.0
    %854 = vmatpush1.msra.mxu0 0.0
    %855 = vmatprep.subr.mxu0 0.0
    %856 = vmatpush1.msra.mxu0 0.0
    %857 = vmatprep.subr.mxu0 0.0
    %858 = vmatpush1.msra.mxu0 0.0
    %859 = vmatprep.subr.mxu0 0.0
    %860 = vmatpush1.msra.mxu0 0.0
    %861 = vmatprep.subr.mxu0 0.0
    %862 = vmatpush1.msra.mxu0 0.0
    %863 = vmatprep.subr.mxu0 0.0
    %864 = vmatpush1.msra.mxu0 0.0
    %865 = vmatprep.subr.mxu0 0.0
    %866 = vmatpush1.msra.mxu0 0.0
    %867 = vmatprep.subr.mxu0 0.0
    %868 = vmatpush1.msra.mxu0 0.0
    %869 = vmatprep.subr.mxu0 0.0
    %870 = vmatpush1.msra.mxu0 0.0
    %871 = vmatprep.subr.mxu0 0.0
    %872 = vmatpush1.msra.mxu0 0.0
    %873 = vmatprep.subr.mxu0 0.0
    %874 = vmatpush1.msra.mxu0 0.0
    %875 = vmatprep.subr.mxu0 0.0
    %876 = vmatpush1.msra.mxu0 0.0
    %877 = vmatprep.subr.mxu0 0.0
    %878 = vmatpush1.msra.mxu0 0.0
    %879 = vmatprep.subr.mxu0 0.0
    %880 = vmatpush1.msra.mxu0 0.0
    %881 = vmatprep.mubr.f32.mxu0 0.0
    %882 = vmatmul.mubr.f32.gmra.mrb[0].mxu0 %v814
    %v883 = vpop.f32.mrb[0].mxu0
    %v884 = vadd.f32 0.0, %v883
    %v885 = vpop.f32.mrb[0].mxu0
    %886 = vdwg.mxu0
    %v887 = vadd.f32 %v816, %v884
    %v888 = vtanh.pop %v887
    %s889 = scalar_lea.vmem [#allocation3], 24
    %v890 = vld [vmem:[%s889] sm:$0xff]
    %891 = vmatprep.subr.mxu0 0.0
    %892 = vmatpush1.msra.mxu0 %v652
    %893 = vmatprep.subr.mxu0 0.0
    %894 = vmatpush1.msra.mxu0 %v653
    %895 = vmatprep.subr.mxu0 0.0
    %896 = vmatpush1.msra.mxu0 %v654
    %897 = vmatprep.subr.mxu0 0.0
    %898 = vmatpush1.msra.mxu0 %v655
    %899 = vmatprep.subr.mxu0 0.0
    %900 = vmatpush1.msra.mxu0 %v656
    %901 = vmatprep.subr.mxu0 0.0
    %902 = vmatpush1.msra.mxu0 %v657
    %903 = vmatprep.subr.mxu0 0.0
    %904 = vmatpush1.msra.mxu0 %v658
    %905 = vmatprep.subr.mxu0 0.0
    %906 = vmatpush1.msra.mxu0 %v659
    %907 = vmatprep.subr.mxu0 0.0
    %908 = vmatpush1.msra.mxu0 %v660
    %909 = vmatprep.subr.mxu0 0.0
    %910 = vmatpush1.msra.mxu0 %v661
    %911 = vmatprep.subr.mxu0 0.0
    %912 = vmatpush1.msra.mxu0 %v662
    %913 = vmatprep.subr.mxu0 0.0
    %914 = vmatpush1.msra.mxu0 %v663
    %915 = vmatprep.subr.mxu0 0.0
    %916 = vmatpush1.msra.mxu0 %v664
    %917 = vmatprep.subr.mxu0 0.0
    %918 = vmatpush1.msra.mxu0 %v665
    %919 = vmatprep.subr.mxu0 0.0
    %920 = vmatpush1.msra.mxu0 %v666
    %921 = vmatprep.subr.mxu0 0.0
    %922 = vmatpush1.msra.mxu0 %v667
    %923 = vmatprep.subr.mxu0 0.0
    %924 = vmatpush1.msra.mxu0 0.0
    %925 = vmatprep.subr.mxu0 0.0
    %926 = vmatpush1.msra.mxu0 0.0
    %927 = vmatprep.subr.mxu0 0.0
    %928 = vmatpush1.msra.mxu0 0.0
    %929 = vmatprep.subr.mxu0 0.0
    %930 = vmatpush1.msra.mxu0 0.0
    %931 = vmatprep.subr.mxu0 0.0
    %932 = vmatpush1.msra.mxu0 0.0
    %933 = vmatprep.subr.mxu0 0.0
    %934 = vmatpush1.msra.mxu0 0.0
    %935 = vmatprep.subr.mxu0 0.0
    %936 = vmatpush1.msra.mxu0 0.0
    %937 = vmatprep.subr.mxu0 0.0
    %938 = vmatpush1.msra.mxu0 0.0
    %939 = vmatprep.subr.mxu0 0.0
    %940 = vmatpush1.msra.mxu0 0.0
    %941 = vmatprep.subr.mxu0 0.0
    %942 = vmatpush1.msra.mxu0 0.0
    %943 = vmatprep.subr.mxu0 0.0
    %944 = vmatpush1.msra.mxu0 0.0
    %945 = vmatprep.subr.mxu0 0.0
    %946 = vmatpush1.msra.mxu0 0.0
    %947 = vmatprep.subr.mxu0 0.0
    %948 = vmatpush1.msra.mxu0 0.0
    %949 = vmatprep.subr.mxu0 0.0
    %950 = vmatpush1.msra.mxu0 0.0
    %951 = vmatprep.subr.mxu0 0.0
    %952 = vmatpush1.msra.mxu0 0.0
    %953 = vmatprep.subr.mxu0 0.0
    %954 = vmatpush1.msra.mxu0 0.0
    %955 = vmatprep.mubr.f32.mxu0 0.0
    %956 = vmatmul.mubr.f32.gmra.mrb[0].mxu0 %v888
    %v957 = vpop.f32.mrb[0].mxu0
    %v958 = vadd.f32 0.0, %v957
    %v959 = vpop.f32.mrb[0].mxu0
    %960 = vdwg.mxu0
    %v961 = vadd.f32 %v890, %v958
    %v962 = vtanh.pop %v961
    %s963 = scalar_lea.vmem [#allocation3], 32
    %v964 = vld [vmem:[%s963] sm:$0xff]
    %965 = vmatprep.subr.mxu0 0.0
    %966 = vmatpush1.msra.mxu0 %v652
    %967 = vmatprep.subr.mxu0 0.0
    %968 = vmatpush1.msra.mxu0 %v653
    %969 = vmatprep.subr.mxu0 0.0
    %970 = vmatpush1.msra.mxu0 %v654
    %971 = vmatprep.subr.mxu0 0.0
    %972 = vmatpush1.msra.mxu0 %v655
    %973 = vmatprep.subr.mxu0 0.0
    %974 = vmatpush1.msra.mxu0 %v656
    %975 = vmatprep.subr.mxu0 0.0
    %976 = vmatpush1.msra.mxu0 %v657
    %977 = vmatprep.subr.mxu0 0.0
    %978 = vmatpush1.msra.mxu0 %v658
    %979 = vmatprep.subr.mxu0 0.0
    %980 = vmatpush1.msra.mxu0 %v659
    %981 = vmatprep.subr.mxu0 0.0
    %982 = vmatpush1.msra.mxu0 %v660
    %983 = vmatprep.subr.mxu0 0.0
    %984 = vmatpush1.msra.mxu0 %v661
    %985 = vmatprep.subr.mxu0 0.0
    %986 = vmatpush1.msra.mxu0 %v662
    %987 = vmatprep.subr.mxu0 0.0
    %988 = vmatpush1.msra.mxu0 %v663
    %989 = vmatprep.subr.mxu0 0.0
    %990 = vmatpush1.msra.mxu0 %v664
    %991 = vmatprep.subr.mxu0 0.0
    %992 = vmatpush1.msra.mxu0 %v665
    %993 = vmatprep.subr.mxu0 0.0
    %994 = vmatpush1.msra.mxu0 %v666
    %995 = vmatprep.subr.mxu0 0.0
    %996 = vmatpush1.msra.mxu0 %v667
    %997 = vmatprep.subr.mxu0 0.0
    %998 = vmatpush1.msra.mxu0 0.0
    %999 = vmatprep.subr.mxu0 0.0
    %1000 = vmatpush1.msra.mxu0 0.0
    %1001 = vmatprep.subr.mxu0 0.0
    %1002 = vmatpush1.msra.mxu0 0.0
    %1003 = vmatprep.subr.mxu0 0.0
    %1004 = vmatpush1.msra.mxu0 0.0
    %1005 = vmatprep.subr.mxu0 0.0
    %1006 = vmatpush1.msra.mxu0 0.0
    %1007 = vmatprep.subr.mxu0 0.0
    %1008 = vmatpush1.msra.mxu0 0.0
    %1009 = vmatprep.subr.mxu0 0.0
    %1010 = vmatpush1.msra.mxu0 0.0
    %1011 = vmatprep.subr.mxu0 0.0
    %1012 = vmatpush1.msra.mxu0 0.0
    %1013 = vmatprep.subr.mxu0 0.0
    %1014 = vmatpush1.msra.mxu0 0.0
    %1015 = vmatprep.subr.mxu0 0.0
    %1016 = vmatpush1.msra.mxu0 0.0
    %1017 = vmatprep.subr.mxu0 0.0
    %1018 = vmatpush1.msra.mxu0 0.0
    %1019 = vmatprep.subr.mxu0 0.0
    %1020 = vmatpush1.msra.mxu0 0.0
    %1021 = vmatprep.subr.mxu0 0.0
    %1022 = vmatpush1.msra.mxu0 0.0
    %1023 = vmatprep.subr.mxu0 0.0
    %1024 = vmatpush1.msra.mxu0 0.0
    %1025 = vmatprep.subr.mxu0 0.0
    %1026 = vmatpush1.msra.mxu0 0.0
    %1027 = vmatprep.subr.mxu0 0.0
    %1028 = vmatpush1.msra.mxu0 0.0
    %1029 = vmatprep.mubr.f32.mxu0 0.0
    %1030 = vmatmul.mubr.f32.gmra.mrb[0].mxu0 %v962
    %v1031 = vpop.f32.mrb[0].mxu0
    %v1032 = vadd.f32 0.0, %v1031
    %v1033 = vpop.f32.mrb[0].mxu0
    %1034 = vdwg.mxu0
    %v1035 = vadd.f32 %v964, %v1032
    %v1036 = vtanh.pop %v1035
    %s1037 = scalar_lea.vmem [#allocation3], 40
    %v1038 = vld [vmem:[%s1037] sm:$0xff]
    %1039 = vmatprep.subr.mxu0 0.0
    %1040 = vmatpush1.msra.mxu0 %v652
    %1041 = vmatprep.subr.mxu0 0.0
    %1042 = vmatpush1.msra.mxu0 %v653
    %1043 = vmatprep.subr.mxu0 0.0
    %1044 = vmatpush1.msra.mxu0 %v654
    %1045 = vmatprep.subr.mxu0 0.0
    %1046 = vmatpush1.msra.mxu0 %v655
    %1047 = vmatprep.subr.mxu0 0.0
    %1048 = vmatpush1.msra.mxu0 %v656
    %1049 = vmatprep.subr.mxu0 0.0
    %1050 = vmatpush1.msra.mxu0 %v657
    %1051 = vmatprep.subr.mxu0 0.0
    %1052 = vmatpush1.msra.mxu0 %v658
    %1053 = vmatprep.subr.mxu0 0.0
    %1054 = vmatpush1.msra.mxu0 %v659
    %1055 = vmatprep.subr.mxu0 0.0
    %1056 = vmatpush1.msra.mxu0 %v660
    %1057 = vmatprep.subr.mxu0 0.0
    %1058 = vmatpush1.msra.mxu0 %v661
    %1059 = vmatprep.subr.mxu0 0.0
    %1060 = vmatpush1.msra.mxu0 %v662
    %1061 = vmatprep.subr.mxu0 0.0
    %1062 = vmatpush1.msra.mxu0 %v663
    %1063 = vmatprep.subr.mxu0 0.0
    %1064 = vmatpush1.msra.mxu0 %v664
    %1065 = vmatprep.subr.mxu0 0.0
    %1066 = vmatpush1.msra.mxu0 %v665
    %1067 = vmatprep.subr.mxu0 0.0
    %1068 = vmatpush1.msra.mxu0 %v666
    %1069 = vmatprep.subr.mxu0 0.0
    %1070 = vmatpush1.msra.mxu0 %v667
    %1071 = vmatprep.subr.mxu0 0.0
    %1072 = vmatpush1.msra.mxu0 0.0
    %1073 = vmatprep.subr.mxu0 0.0
    %1074 = vmatpush1.msra.mxu0 0.0
    %1075 = vmatprep.subr.mxu0 0.0
    %1076 = vmatpush1.msra.mxu0 0.0
    %1077 = vmatprep.subr.mxu0 0.0
    %1078 = vmatpush1.msra.mxu0 0.0
    %1079 = vmatprep.subr.mxu0 0.0
    %1080 = vmatpush1.msra.mxu0 0.0
    %1081 = vmatprep.subr.mxu0 0.0
    %1082 = vmatpush1.msra.mxu0 0.0
    %1083 = vmatprep.subr.mxu0 0.0
    %1084 = vmatpush1.msra.mxu0 0.0
    %1085 = vmatprep.subr.mxu0 0.0
    %1086 = vmatpush1.msra.mxu0 0.0
    %1087 = vmatprep.subr.mxu0 0.0
    %1088 = vmatpush1.msra.mxu0 0.0
    %1089 = vmatprep.subr.mxu0 0.0
    %1090 = vmatpush1.msra.mxu0 0.0
    %1091 = vmatprep.subr.mxu0 0.0
    %1092 = vmatpush1.msra.mxu0 0.0
    %1093 = vmatprep.subr.mxu0 0.0
    %1094 = vmatpush1.msra.mxu0 0.0
    %1095 = vmatprep.subr.mxu0 0.0
    %1096 = vmatpush1.msra.mxu0 0.0
    %1097 = vmatprep.subr.mxu0 0.0
    %1098 = vmatpush1.msra.mxu0 0.0
    %1099 = vmatprep.subr.mxu0 0.0
    %1100 = vmatpush1.msra.mxu0 0.0
    %1101 = vmatprep.subr.mxu0 0.0
    %1102 = vmatpush1.msra.mxu0 0.0
    %1103 = vmatprep.mubr.f32.mxu0 0.0
    %1104 = vmatmul.mubr.f32.gmra.mrb[0].mxu0 %v1036
    %v1105 = vpop.f32.mrb[0].mxu0
    %v1106 = vadd.f32 0.0, %v1105
    %v1107 = vpop.f32.mrb[0].mxu0
    %1108 = vdwg.mxu0
    %v1109 = vadd.f32 %v1038, %v1106
    %v1110 = vtanh.pop %v1109
    %s1111 = scalar_lea.vmem [#allocation3], 48
    %v1112 = vld [vmem:[%s1111] sm:$0xff]
    %1113 = vmatprep.subr.mxu0 0.0
    %1114 = vmatpush1.msra.mxu0 %v652
    %1115 = vmatprep.subr.mxu0 0.0
    %1116 = vmatpush1.msra.mxu0 %v653
    %1117 = vmatprep.subr.mxu0 0.0
    %1118 = vmatpush1.msra.mxu0 %v654
    %1119 = vmatprep.subr.mxu0 0.0
    %1120 = vmatpush1.msra.mxu0 %v655
    %1121 = vmatprep.subr.mxu0 0.0
    %1122 = vmatpush1.msra.mxu0 %v656
    %1123 = vmatprep.subr.mxu0 0.0
    %1124 = vmatpush1.msra.mxu0 %v657
    %1125 = vmatprep.subr.mxu0 0.0
    %1126 = vmatpush1.msra.mxu0 %v658
    %1127 = vmatprep.subr.mxu0 0.0
    %1128 = vmatpush1.msra.mxu0 %v659
    %1129 = vmatprep.subr.mxu0 0.0
    %1130 = vmatpush1.msra.mxu0 %v660
    %1131 = vmatprep.subr.mxu0 0.0
    %1132 = vmatpush1.msra.mxu0 %v661
    %1133 = vmatprep.subr.mxu0 0.0
    %1134 = vmatpush1.msra.mxu0 %v662
    %1135 = vmatprep.subr.mxu0 0.0
    %1136 = vmatpush1.msra.mxu0 %v663
    %1137 = vmatprep.subr.mxu0 0.0
    %1138 = vmatpush1.msra.mxu0 %v664
    %1139 = vmatprep.subr.mxu0 0.0
    %1140 = vmatpush1.msra.mxu0 %v665
    %1141 = vmatprep.subr.mxu0 0.0
    %1142 = vmatpush1.msra.mxu0 %v666
    %1143 = vmatprep.subr.mxu0 0.0
    %1144 = vmatpush1.msra.mxu0 %v667
    %1145 = vmatprep.subr.mxu0 0.0
    %1146 = vmatpush1.msra.mxu0 0.0
    %1147 = vmatprep.subr.mxu0 0.0
    %1148 = vmatpush1.msra.mxu0 0.0
    %1149 = vmatprep.subr.mxu0 0.0
    %1150 = vmatpush1.msra.mxu0 0.0
    %1151 = vmatprep.subr.mxu0 0.0
    %1152 = vmatpush1.msra.mxu0 0.0
    %1153 = vmatprep.subr.mxu0 0.0
    %1154 = vmatpush1.msra.mxu0 0.0
    %1155 = vmatprep.subr.mxu0 0.0
    %1156 = vmatpush1.msra.mxu0 0.0
    %1157 = vmatprep.subr.mxu0 0.0
    %1158 = vmatpush1.msra.mxu0 0.0
    %1159 = vmatprep.subr.mxu0 0.0
    %1160 = vmatpush1.msra.mxu0 0.0
    %1161 = vmatprep.subr.mxu0 0.0
    %1162 = vmatpush1.msra.mxu0 0.0
    %1163 = vmatprep.subr.mxu0 0.0
    %1164 = vmatpush1.msra.mxu0 0.0
    %1165 = vmatprep.subr.mxu0 0.0
    %1166 = vmatpush1.msra.mxu0 0.0
    %1167 = vmatprep.subr.mxu0 0.0
    %1168 = vmatpush1.msra.mxu0 0.0
    %1169 = vmatprep.subr.mxu0 0.0
    %1170 = vmatpush1.msra.mxu0 0.0
    %1171 = vmatprep.subr.mxu0 0.0
    %1172 = vmatpush1.msra.mxu0 0.0
    %1173 = vmatprep.subr.mxu0 0.0
    %1174 = vmatpush1.msra.mxu0 0.0
    %1175 = vmatprep.subr.mxu0 0.0
    %1176 = vmatpush1.msra.mxu0 0.0
    %1177 = vmatprep.mubr.f32.mxu0 0.0
    %1178 = vmatmul.mubr.f32.gmra.mrb[0].mxu0 %v1110
    %v1179 = vpop.f32.mrb[0].mxu0
    %v1180 = vadd.f32 0.0, %v1179
    %v1181 = vpop.f32.mrb[0].mxu0
    %1182 = vdwg.mxu0
    %v1183 = vadd.f32 %v1112, %v1180
    %v1184 = vtanh.pop %v1183
    %s1185 = scalar_lea.vmem [#allocation3], 56
    %v1186 = vld [vmem:[%s1185] sm:$0xff]
    %1187 = vmatprep.subr.mxu0 0.0
    %1188 = vmatpush1.msra.mxu0 %v652
    %1189 = vmatprep.subr.mxu0 0.0
    %1190 = vmatpush1.msra.mxu0 %v653
    %1191 = vmatprep.subr.mxu0 0.0
    %1192 = vmatpush1.msra.mxu0 %v654
    %1193 = vmatprep.subr.mxu0 0.0
    %1194 = vmatpush1.msra.mxu0 %v655
    %1195 = vmatprep.subr.mxu0 0.0
    %1196 = vmatpush1.msra.mxu0 %v656
    %1197 = vmatprep.subr.mxu0 0.0
    %1198 = vmatpush1.msra.mxu0 %v657
    %1199 = vmatprep.subr.mxu0 0.0
    %1200 = vmatpush1.msra.mxu0 %v658
    %1201 = vmatprep.subr.mxu0 0.0
    %1202 = vmatpush1.msra.mxu0 %v659
    %1203 = vmatprep.subr.mxu0 0.0
    %1204 = vmatpush1.msra.mxu0 %v660
    %1205 = vmatprep.subr.mxu0 0.0
    %1206 = vmatpush1.msra.mxu0 %v661
    %1207 = vmatprep.subr.mxu0 0.0
    %1208 = vmatpush1.msra.mxu0 %v662
    %1209 = vmatprep.subr.mxu0 0.0
    %1210 = vmatpush1.msra.mxu0 %v663
    %1211 = vmatprep.subr.mxu0 0.0
    %1212 = vmatpush1.msra.mxu0 %v664
    %1213 = vmatprep.subr.mxu0 0.0
    %1214 = vmatpush1.msra.mxu0 %v665
    %1215 = vmatprep.subr.mxu0 0.0
    %1216 = vmatpush1.msra.mxu0 %v666
    %1217 = vmatprep.subr.mxu0 0.0
    %1218 = vmatpush1.msra.mxu0 %v667
    %1219 = vmatprep.subr.mxu0 0.0
    %1220 = vmatpush1.msra.mxu0 0.0
    %1221 = vmatprep.subr.mxu0 0.0
    %1222 = vmatpush1.msra.mxu0 0.0
    %1223 = vmatprep.subr.mxu0 0.0
    %1224 = vmatpush1.msra.mxu0 0.0
    %1225 = vmatprep.subr.mxu0 0.0
    %1226 = vmatpush1.msra.mxu0 0.0
    %1227 = vmatprep.subr.mxu0 0.0
    %1228 = vmatpush1.msra.mxu0 0.0
    %1229 = vmatprep.subr.mxu0 0.0
    %1230 = vmatpush1.msra.mxu0 0.0
    %1231 = vmatprep.subr.mxu0 0.0
    %1232 = vmatpush1.msra.mxu0 0.0
    %1233 = vmatprep.subr.mxu0 0.0
    %1234 = vmatpush1.msra.mxu0 0.0
    %1235 = vmatprep.subr.mxu0 0.0
    %1236 = vmatpush1.msra.mxu0 0.0
    %1237 = vmatprep.subr.mxu0 0.0
    %1238 = vmatpush1.msra.mxu0 0.0
    %1239 = vmatprep.subr.mxu0 0.0
    %1240 = vmatpush1.msra.mxu0 0.0
    %1241 = vmatprep.subr.mxu0 0.0
    %1242 = vmatpush1.msra.mxu0 0.0
    %1243 = vmatprep.subr.mxu0 0.0
    %1244 = vmatpush1.msra.mxu0 0.0
    %1245 = vmatprep.subr.mxu0 0.0
    %1246 = vmatpush1.msra.mxu0 0.0
    %1247 = vmatprep.subr.mxu0 0.0
    %1248 = vmatpush1.msra.mxu0 0.0
    %1249 = vmatprep.subr.mxu0 0.0
    %1250 = vmatpush1.msra.mxu0 0.0
    %1251 = vmatprep.mubr.f32.mxu0 0.0
    %1252 = vmatmul.mubr.f32.gmra.mrb[0].mxu0 %v1184
    %v1253 = vpop.f32.mrb[0].mxu0
    %v1254 = vadd.f32 0.0, %v1253
    %v1255 = vpop.f32.mrb[0].mxu0
    %1256 = vdwg.mxu0
    %v1257 = vadd.f32 %v1186, %v1254
    %v1258 = vtanh.pop %v1257
    %v1259 = vld [vmem:[#allocation11] sm:$0xff]
    %v1260 = vld [vmem:[#allocation11 + $0x8] sm:$0xff]
    %v1261 = vld [vmem:[#allocation11 + $0x10] sm:$0xff]
    %v1262 = vld [vmem:[#allocation11 + $0x18] sm:$0xff]
    %v1263 = vld [vmem:[#allocation11 + $0x20] sm:$0xff]
    %v1264 = vld [vmem:[#allocation11 + $0x28] sm:$0xff]
    %v1265 = vld [vmem:[#allocation11 + $0x30] sm:$0xff]
    %v1266 = vld [vmem:[#allocation11 + $0x38] sm:$0xff]
    %v1267 = vld [vmem:[#allocation11 + $0x40] sm:$0xff]
    %v1268 = vld [vmem:[#allocation11 + $0x48] sm:$0xff]
    %v1269 = vld [vmem:[#allocation11 + $0x50] sm:$0xff]
    %v1270 = vld [vmem:[#allocation11 + $0x58] sm:$0xff]
    %v1271 = vld [vmem:[#allocation11 + $0x60] sm:$0xff]
    %v1272 = vld [vmem:[#allocation11 + $0x68] sm:$0xff]
    %v1273 = vld [vmem:[#allocation11 + $0x70] sm:$0xff]
    %v1274 = vld [vmem:[#allocation11 + $0x78] sm:$0xff]
    %v1275 = vld [vmem:[%s6] sm:$0x1]
    %v1277 = vlaneseq
    %v1278 = vshrl.u32 %v1277, 7
    %v1279 = vsub.s32 0, %v1278
    %v1280 = vrot.slane %v1275, %v1279
    %1282 = vmatprep.subr.mxu0 0.0
    %1283 = vmatpush1.msra.mxu0 %v1259
    %1284 = vmatprep.subr.mxu0 0.0
    %1285 = vmatpush1.msra.mxu0 %v1260
    %1286 = vmatprep.subr.mxu0 0.0
    %1287 = vmatpush1.msra.mxu0 %v1261
    %1288 = vmatprep.subr.mxu0 0.0
    %1289 = vmatpush1.msra.mxu0 %v1262
    %1290 = vmatprep.subr.mxu0 0.0
    %1291 = vmatpush1.msra.mxu0 %v1263
    %1292 = vmatprep.subr.mxu0 0.0
    %1293 = vmatpush1.msra.mxu0 %v1264
    %1294 = vmatprep.subr.mxu0 0.0
    %1295 = vmatpush1.msra.mxu0 %v1265
    %1296 = vmatprep.subr.mxu0 0.0
    %1297 = vmatpush1.msra.mxu0 %v1266
    %1298 = vmatprep.subr.mxu0 0.0
    %1299 = vmatpush1.msra.mxu0 %v1267
    %1300 = vmatprep.subr.mxu0 0.0
    %1301 = vmatpush1.msra.mxu0 %v1268
    %1302 = vmatprep.subr.mxu0 0.0
    %1303 = vmatpush1.msra.mxu0 %v1269
    %1304 = vmatprep.subr.mxu0 0.0
    %1305 = vmatpush1.msra.mxu0 %v1270
    %1306 = vmatprep.subr.mxu0 0.0
    %1307 = vmatpush1.msra.mxu0 %v1271
    %1308 = vmatprep.subr.mxu0 0.0
    %1309 = vmatpush1.msra.mxu0 %v1272
    %1310 = vmatprep.subr.mxu0 0.0
    %1311 = vmatpush1.msra.mxu0 %v1273
    %1312 = vmatprep.subr.mxu0 0.0
    %1313 = vmatpush1.msra.mxu0 %v1274
    %1314 = vmatprep.subr.mxu0 0.0
    %1315 = vmatpush1.msra.mxu0 0.0
    %1316 = vmatprep.subr.mxu0 0.0
    %1317 = vmatpush1.msra.mxu0 0.0
    %1318 = vmatprep.subr.mxu0 0.0
    %1319 = vmatpush1.msra.mxu0 0.0
    %1320 = vmatprep.subr.mxu0 0.0
    %1321 = vmatpush1.msra.mxu0 0.0
    %1322 = vmatprep.subr.mxu0 0.0
    %1323 = vmatpush1.msra.mxu0 0.0
    %1324 = vmatprep.subr.mxu0 0.0
    %1325 = vmatpush1.msra.mxu0 0.0
    %1326 = vmatprep.subr.mxu0 0.0
    %1327 = vmatpush1.msra.mxu0 0.0
    %1328 = vmatprep.subr.mxu0 0.0
    %1329 = vmatpush1.msra.mxu0 0.0
    %1330 = vmatprep.subr.mxu0 0.0
    %1331 = vmatpush1.msra.mxu0 0.0
    %1332 = vmatprep.subr.mxu0 0.0
    %1333 = vmatpush1.msra.mxu0 0.0
    %1334 = vmatprep.subr.mxu0 0.0
    %1335 = vmatpush1.msra.mxu0 0.0
    %1336 = vmatprep.subr.mxu0 0.0
    %1337 = vmatpush1.msra.mxu0 0.0
    %1338 = vmatprep.subr.mxu0 0.0
    %1339 = vmatpush1.msra.mxu0 0.0
    %1340 = vmatprep.subr.mxu0 0.0
    %1341 = vmatpush1.msra.mxu0 0.0
    %1342 = vmatprep.subr.mxu0 0.0
    %1343 = vmatpush1.msra.mxu0 0.0
    %1344 = vmatprep.subr.mxu0 0.0
    %1345 = vmatpush1.msra.mxu0 0.0
    %1346 = vmatprep.mubr.f32.mxu0 0.0
    %1347 = vmatmul.mubr.f32.gmra.mrb[0].mxu0 %v1258
    %v1348 = vpop.f32.mrb[0].mxu0
    %v1349 = vadd.f32 %v1280, %v1348
    %v1350 = vpop.f32.mrb[0].mxu0
    %1351 = vdwg.mxu0
    %1352 = vst [vmem:[%s7] sm:$0xff] %v1349
    // Predicated region
    $region42: #{rnn_forward.1} parent=1 // pred_check
      _
    $region43: #{rnn_forward.1} parent=1 // pred_check_branch
      %1354 = sbr.rel (0) target = $region45
    $region44: #{rnn_forward.1} parent=1 // pred_region
      _
    $region45: #{rnn_forward.1} parent=1 // pred_fallthru
      _
    // Predicated region
    $region46: #{rnn_forward.1} parent=1 // pred_check
      _
    $region47: #{rnn_forward.1} parent=1 // pred_check_branch
      %1356 = sbr.rel (0) target = $region49
    $region48: #{rnn_forward.1} parent=1 // pred_region
      _
    $region49: #{rnn_forward.1} parent=1 // pred_fallthru
      _
    %1357 = vsyncpa [#allocation6], 1
    %1358 = vsyncpa [#allocation10], 1
    %1359 = vsyncpa [#allocation7], 1
  %1360 = vsyncmov [#allocation4]
  %s1361 = vpop.sfrf %1360
  %p1362 = scmp.eq.s32.totalorder %s1361, 0
  %p1363 = pneg %p1362
  %1365 = shalt.err (%p1363)
  %s1366 = scalar_lea.sflag [#allocation4], 1
  %1367 = vsyncmov %s1366
  %s1368 = vpop.sfrf %1367
  %p1369 = scmp.eq.s32.totalorder %s1368, 0
  %p1370 = pneg %p1369
  %1372 = shalt.err (%p1370)
  %s1373 = scalar_lea.sflag [#allocation4], 2
  %1374 = vsyncmov %s1373
  %s1375 = vpop.sfrf %1374
  %p1376 = scmp.eq.s32.totalorder %s1375, 0
  %p1377 = pneg %p1376
  %1379 = shalt.err (%p1377)
  %s1380 = scalar_lea.sflag [#allocation4], 3
  %1381 = vsyncmov %s1380
  %s1382 = vpop.sfrf %1381
  %p1383 = scmp.eq.s32.totalorder %s1382, 0
  %p1384 = pneg %p1383
  %1386 = shalt.err (%p1384)
  %s1387 = scalar_lea.sflag [#allocation4], 4
  %1388 = vsyncmov %s1387
  %s1389 = vpop.sfrf %1388
  %p1390 = scmp.eq.s32.totalorder %s1389, 0
  %p1391 = pneg %p1390
  %1393 = shalt.err (%p1391)
  %s1394 = scalar_lea.sflag [#allocation4], 5
  %1395 = vsyncmov %s1394
  %s1396 = vpop.sfrf %1395
  %p1397 = scmp.eq.s32.totalorder %s1396, 0
  %p1398 = pneg %p1397
  %1400 = shalt.err (%p1398)
  %s1401 = scalar_lea.sflag [#allocation4], 6
  %1402 = vsyncmov %s1401
  %s1403 = vpop.sfrf %1402
  %p1404 = scmp.eq.s32.totalorder %s1403, 0
  %p1405 = pneg %p1404
  %1407 = shalt.err (%p1405)
  %s1408 = scalar_lea.sflag [#allocation4], 7
  %1409 = vsyncmov %s1408
  %s1410 = vpop.sfrf %1409
  %p1411 = scmp.eq.s32.totalorder %s1410, 0
  %p1412 = pneg %p1411
  %1414 = shalt.err (%p1412)
  %s1415 = scalar_lea.sflag [#allocation4], 8
  %1416 = vsyncmov %s1415
  %s1417 = vpop.sfrf %1416
  %p1418 = scmp.eq.s32.totalorder %s1417, 0
  %p1419 = pneg %p1418
  %1421 = shalt.err (%p1419)
  %s1422 = scalar_lea.sflag [#allocation4], 9
  %1423 = vsyncmov %s1422
  %s1424 = vpop.sfrf %1423
  %p1425 = scmp.eq.s32.totalorder %s1424, 0
  %p1426 = pneg %p1425
  %1428 = shalt.err (%p1426)
  %s1429 = scalar_lea.sflag [#allocation4], 10
  %1430 = vsyncmov %s1429
  %s1431 = vpop.sfrf %1430
  %p1432 = scmp.eq.s32.totalorder %s1431, 0
  %p1433 = pneg %p1432
  %1435 = shalt.err (%p1433)
  %s1436 = scalar_lea.sflag [#allocation4], 11
  %1437 = vsyncmov %s1436
  %s1438 = vpop.sfrf %1437
  %p1439 = scmp.eq.s32.totalorder %s1438, 0
  %p1440 = pneg %p1439
  %1442 = shalt.err (%p1440)
  %s1443 = scalar_lea.sflag [#allocation4], 12
  %1444 = vsyncmov %s1443
  %s1445 = vpop.sfrf %1444
  %p1446 = scmp.eq.s32.totalorder %s1445, 0
  %p1447 = pneg %p1446
  %1449 = shalt.err (%p1447)
  %s1450 = scalar_lea.sflag [#allocation4], 13
  %1451 = vsyncmov %s1450
  %s1452 = vpop.sfrf %1451
  %p1453 = scmp.eq.s32.totalorder %s1452, 0
  %p1454 = pneg %p1453
  %1456 = shalt.err (%p1454)
  %s1457 = scalar_lea.sflag [#allocation4], 14
  %1458 = vsyncmov %s1457
  %s1459 = vpop.sfrf %1458
  %p1460 = scmp.eq.s32.totalorder %s1459, 0
  %p1461 = pneg %p1460
  %1463 = shalt.err (%p1461)
  %s1464 = scalar_lea.sflag [#allocation4], 15
  %1465 = vsyncmov %s1464
  %s1466 = vpop.sfrf %1465
  %p1467 = scmp.eq.s32.totalorder %s1466, 0
  %p1468 = pneg %p1467
  %1470 = shalt.err (%p1468)
  %s1471 = scalar_lea.sflag [#allocation4], 16
  %1472 = vsyncmov %s1471
  %s1473 = vpop.sfrf %1472
  %p1474 = scmp.eq.s32.totalorder %s1473, 0
  %p1475 = pneg %p1474
  %1477 = shalt.err (%p1475)
  %s1478 = scalar_lea.sflag [#allocation4], 17
  %1479 = vsyncmov %s1478
  %s1480 = vpop.sfrf %1479
  %p1481 = scmp.eq.s32.totalorder %s1480, 0
  %p1482 = pneg %p1481
  %1484 = shalt.err (%p1482)
  %s1485 = scalar_lea.sflag [#allocation4], 18
  %1486 = vsyncmov %s1485
  %s1487 = vpop.sfrf %1486
  %p1488 = scmp.eq.s32.totalorder %s1487, 0
  %p1489 = pneg %p1488
  %1491 = shalt.err (%p1489)
  %s1492 = scalar_lea.sflag [#allocation4], 19
  %1493 = vsyncmov %s1492
  %s1494 = vpop.sfrf %1493
  %p1495 = scmp.eq.s32.totalorder %s1494, 0
  %p1496 = pneg %p1495
  %1498 = shalt.err (%p1496)
  %s1499 = scalar_lea.sflag [#allocation4], 20
  %1500 = vsyncmov %s1499
  %s1501 = vpop.sfrf %1500
  %p1502 = scmp.eq.s32.totalorder %s1501, 0
  %p1503 = pneg %p1502
  %1505 = shalt.err (%p1503)
  %s1506 = scalar_lea.sflag [#allocation4], 21
  %1507 = vsyncmov %s1506
  %s1508 = vpop.sfrf %1507
  %p1509 = scmp.eq.s32.totalorder %s1508, 0
  %p1510 = pneg %p1509
  %1512 = shalt.err (%p1510)
  %s1513 = scalar_lea.sflag [#allocation4], 22
  %1514 = vsyncmov %s1513
  %s1515 = vpop.sfrf %1514
  %p1516 = scmp.eq.s32.totalorder %s1515, 0
  %p1517 = pneg %p1516
  %1519 = shalt.err (%p1517)
  %s1520 = scalar_lea.sflag [#allocation4], 23
  %1521 = vsyncmov %s1520
  %s1522 = vpop.sfrf %1521
  %p1523 = scmp.eq.s32.totalorder %s1522, 0
  %p1524 = pneg %p1523
  %1526 = shalt.err (%p1524)
  %s1527 = scalar_lea.sflag [#allocation4], 24
  %1528 = vsyncmov %s1527
  %s1529 = vpop.sfrf %1528
  %p1530 = scmp.eq.s32.totalorder %s1529, 0
  %p1531 = pneg %p1530
  %1533 = shalt.err (%p1531)
  %s1534 = scalar_lea.sflag [#allocation4], 25
  %1535 = vsyncmov %s1534
  %s1536 = vpop.sfrf %1535
  %p1537 = scmp.eq.s32.totalorder %s1536, 0
  %p1538 = pneg %p1537
  %1540 = shalt.err (%p1538)
  %s1541 = scalar_lea.sflag [#allocation4], 26
  %1542 = vsyncmov %s1541
  %s1543 = vpop.sfrf %1542
  %p1544 = scmp.eq.s32.totalorder %s1543, 0
  %p1545 = pneg %p1544
  %1547 = shalt.err (%p1545)
  %s1548 = scalar_lea.sflag [#allocation4], 27
  %1549 = vsyncmov %s1548
  %s1550 = vpop.sfrf %1549
  %p1551 = scmp.eq.s32.totalorder %s1550, 0
  %p1552 = pneg %p1551
  %1554 = shalt.err (%p1552)
  %s1555 = scalar_lea.sflag [#allocation4], 28
  %1556 = vsyncmov %s1555
  %s1557 = vpop.sfrf %1556
  %p1558 = scmp.eq.s32.totalorder %s1557, 0
  %p1559 = pneg %p1558
  %1561 = shalt.err (%p1559)
  %s1562 = scalar_lea.sflag [#allocation4], 29
  %1563 = vsyncmov %s1562
  %s1564 = vpop.sfrf %1563
  %p1565 = scmp.eq.s32.totalorder %s1564, 0
  %p1566 = pneg %p1565
  %1568 = shalt.err (%p1566)
  %s1569 = scalar_lea.sflag [#allocation4], 30
  %1570 = vsyncmov %s1569
  %s1571 = vpop.sfrf %1570
  %p1572 = scmp.eq.s32.totalorder %s1571, 0
  %p1573 = pneg %p1572
  %1575 = shalt.err (%p1573)
  %s1576 = scalar_lea.sflag [#allocation4], 31
  %1577 = vsyncmov %s1576
  %s1578 = vpop.sfrf %1577
  %p1579 = scmp.eq.s32.totalorder %s1578, 0
  %p1580 = pneg %p1579
  %1582 = shalt.err (%p1580)
  %s1583 = scalar_lea.sflag [#allocation4], 32
  %1584 = vsyncmov %s1583
  %s1585 = vpop.sfrf %1584
  %p1586 = scmp.eq.s32.totalorder %s1585, 0
  %p1587 = pneg %p1586
  %1589 = shalt.err (%p1587)
  %s1590 = scalar_lea.sflag [#allocation4], 33
  %1591 = vsyncmov %s1590
  %s1592 = vpop.sfrf %1591
  %p1593 = scmp.eq.s32.totalorder %s1592, 0
  %p1594 = pneg %p1593
  %1596 = shalt.err (%p1594)
  %s1597 = scalar_lea.sflag [#allocation4], 34
  %1598 = vsyncmov %s1597
  %s1599 = vpop.sfrf %1598
  %p1600 = scmp.eq.s32.totalorder %s1599, 0
  %p1601 = pneg %p1600
  %1603 = shalt.err (%p1601)
  %s1604 = scalar_lea.sflag [#allocation4], 35
  %1605 = vsyncmov %s1604
  %s1606 = vpop.sfrf %1605
  %p1607 = scmp.eq.s32.totalorder %s1606, 0
  %p1608 = pneg %p1607
  %1610 = shalt.err (%p1608)
  %s1611 = scalar_lea.sflag [#allocation4], 36
  %1612 = vsyncmov %s1611
  %s1613 = vpop.sfrf %1612
  %p1614 = scmp.eq.s32.totalorder %s1613, 0
  %p1615 = pneg %p1614
  %1617 = shalt.err (%p1615)
  %s1618 = scalar_lea.sflag [#allocation4], 37
  %1619 = vsyncmov %s1618
  %s1620 = vpop.sfrf %1619
  %p1621 = scmp.eq.s32.totalorder %s1620, 0
  %p1622 = pneg %p1621
  %1624 = shalt.err (%p1622)
  %s1625 = scalar_lea.sflag [#allocation4], 38
  %1626 = vsyncmov %s1625
  %s1627 = vpop.sfrf %1626
  %p1628 = scmp.eq.s32.totalorder %s1627, 0
  %p1629 = pneg %p1628
  %1631 = shalt.err (%p1629)
  %s1632 = scalar_lea.sflag [#allocation4], 39
  %1633 = vsyncmov %s1632
  %s1634 = vpop.sfrf %1633
  %p1635 = scmp.eq.s32.totalorder %s1634, 0
  %p1636 = pneg %p1635
  %1638 = shalt.err (%p1636)
  %s1639 = scalar_lea.sflag [#allocation4], 40
  %1640 = vsyncmov %s1639
  %s1641 = vpop.sfrf %1640
  %p1642 = scmp.eq.s32.totalorder %s1641, 0
  %p1643 = pneg %p1642
  %1645 = shalt.err (%p1643)
  %s1646 = scalar_lea.sflag [#allocation4], 41
  %1647 = vsyncmov %s1646
  %s1648 = vpop.sfrf %1647
  %p1649 = scmp.eq.s32.totalorder %s1648, 0
  %p1650 = pneg %p1649
  %1652 = shalt.err (%p1650)
  %s1653 = scalar_lea.sflag [#allocation4], 42
  %1654 = vsyncmov %s1653
  %s1655 = vpop.sfrf %1654
  %p1656 = scmp.eq.s32.totalorder %s1655, 0
  %p1657 = pneg %p1656
  %1659 = shalt.err (%p1657)
  %s1660 = scalar_lea.sflag [#allocation4], 43
  %1661 = vsyncmov %s1660
  %s1662 = vpop.sfrf %1661
  %p1663 = scmp.eq.s32.totalorder %s1662, 0
  %p1664 = pneg %p1663
  %1666 = shalt.err (%p1664)
  %s1667 = scalar_lea.sflag [#allocation4], 44
  %1668 = vsyncmov %s1667
  %s1669 = vpop.sfrf %1668
  %p1670 = scmp.eq.s32.totalorder %s1669, 0
  %p1671 = pneg %p1670
  %1673 = shalt.err (%p1671)
  %s1674 = scalar_lea.sflag [#allocation4], 45
  %1675 = vsyncmov %s1674
  %s1676 = vpop.sfrf %1675
  %p1677 = scmp.eq.s32.totalorder %s1676, 0
  %p1678 = pneg %p1677
  %1680 = shalt.err (%p1678)
  %s1681 = scalar_lea.sflag [#allocation4], 46
  %1682 = vsyncmov %s1681
  %s1683 = vpop.sfrf %1682
  %p1684 = scmp.eq.s32.totalorder %s1683, 0
  %p1685 = pneg %p1684
  %1687 = shalt.err (%p1685)
  %s1688 = scalar_lea.sflag [#allocation4], 47
  %1689 = vsyncmov %s1688
  %s1690 = vpop.sfrf %1689
  %p1691 = scmp.eq.s32.totalorder %s1690, 0
  %p1692 = pneg %p1691
  %1694 = shalt.err (%p1692)
  %s1695 = scalar_lea.sflag [#allocation4], 48
  %1696 = vsyncmov %s1695
  %s1697 = vpop.sfrf %1696
  %p1698 = scmp.eq.s32.totalorder %s1697, 0
  %p1699 = pneg %p1698
  %1701 = shalt.err (%p1699)
  %s1702 = scalar_lea.sflag [#allocation4], 49
  %1703 = vsyncmov %s1702
  %s1704 = vpop.sfrf %1703
  %p1705 = scmp.eq.s32.totalorder %s1704, 0
  %p1706 = pneg %p1705
  %1708 = shalt.err (%p1706)
  %s1709 = scalar_lea.sflag [#allocation4], 50
  %1710 = vsyncmov %s1709
  %s1711 = vpop.sfrf %1710
  %p1712 = scmp.eq.s32.totalorder %s1711, 0
  %p1713 = pneg %p1712
  %1715 = shalt.err (%p1713)
  %s1716 = scalar_lea.sflag [#allocation4], 51
  %1717 = vsyncmov %s1716
  %s1718 = vpop.sfrf %1717
  %p1719 = scmp.eq.s32.totalorder %s1718, 0
  %p1720 = pneg %p1719
  %1722 = shalt.err (%p1720)
  %s1723 = scalar_lea.sflag [#allocation4], 52
  %1724 = vsyncmov %s1723
  %s1725 = vpop.sfrf %1724
  %p1726 = scmp.eq.s32.totalorder %s1725, 0
  %p1727 = pneg %p1726
  %1729 = shalt.err (%p1727)
  %s1730 = scalar_lea.sflag [#allocation4], 53
  %1731 = vsyncmov %s1730
  %s1732 = vpop.sfrf %1731
  %p1733 = scmp.eq.s32.totalorder %s1732, 0
  %p1734 = pneg %p1733
  %1736 = shalt.err (%p1734)
  %s1737 = scalar_lea.sflag [#allocation4], 54
  %1738 = vsyncmov %s1737
  %s1739 = vpop.sfrf %1738
  %p1740 = scmp.eq.s32.totalorder %s1739, 0
  %p1741 = pneg %p1740
  %1743 = shalt.err (%p1741)
  %s1744 = scalar_lea.sflag [#allocation4], 55
  %1745 = vsyncmov %s1744
  %s1746 = vpop.sfrf %1745
  %p1747 = scmp.eq.s32.totalorder %s1746, 0
  %p1748 = pneg %p1747
  %1750 = shalt.err (%p1748)
  %s1751 = scalar_lea.sflag [#allocation4], 56
  %1752 = vsyncmov %s1751
  %s1753 = vpop.sfrf %1752
  %p1754 = scmp.eq.s32.totalorder %s1753, 0
  %p1755 = pneg %p1754
  %1757 = shalt.err (%p1755)
  %s1758 = scalar_lea.sflag [#allocation4], 57
  %1759 = vsyncmov %s1758
  %s1760 = vpop.sfrf %1759
  %p1761 = scmp.eq.s32.totalorder %s1760, 0
  %p1762 = pneg %p1761
  %1764 = shalt.err (%p1762)
  %s1765 = scalar_lea.sflag [#allocation4], 58
  %1766 = vsyncmov %s1765
  %s1767 = vpop.sfrf %1766
  %p1768 = scmp.eq.s32.totalorder %s1767, 0
  %p1769 = pneg %p1768
  %1771 = shalt.err (%p1769)
  %s1772 = scalar_lea.sflag [#allocation4], 59
  %1773 = vsyncmov %s1772
  %s1774 = vpop.sfrf %1773
  %p1775 = scmp.eq.s32.totalorder %s1774, 0
  %p1776 = pneg %p1775
  %1778 = shalt.err (%p1776)
  %s1779 = scalar_lea.sflag [#allocation4], 60
  %1780 = vsyncmov %s1779
  %s1781 = vpop.sfrf %1780
  %p1782 = scmp.eq.s32.totalorder %s1781, 0
  %p1783 = pneg %p1782
  %1785 = shalt.err (%p1783)
  %s1786 = scalar_lea.sflag [#allocation4], 61
  %1787 = vsyncmov %s1786
  %s1788 = vpop.sfrf %1787
  %p1789 = scmp.eq.s32.totalorder %s1788, 0
  %p1790 = pneg %p1789
  %1792 = shalt.err (%p1790)
  %s1793 = scalar_lea.sflag [#allocation4], 62
  %1794 = vsyncmov %s1793
  %s1795 = vpop.sfrf %1794
  %p1796 = scmp.eq.s32.totalorder %s1795, 0
  %p1797 = pneg %p1796
  %1799 = shalt.err (%p1797)
  %s1800 = scalar_lea.sflag [#allocation4], 63
  %1801 = vsyncmov %s1800
  %s1802 = vpop.sfrf %1801
  %p1803 = scmp.eq.s32.totalorder %s1802, 0
  %p1804 = pneg %p1803
  %1806 = shalt.err (%p1804)

</llo_original>
